<compile_context>
chip_gen: v5e
topology: v5e:2x2
jax: 0.10.0
libtpu: 0.0.40
codegen_flags: <defaults>
</compile_context>

<pallas_src>
import math
import jax
import jax.numpy as jnp
from jax.experimental import pallas as pl
from jax.experimental.pallas import tpu as pltpu

# ----------------------- tiny synthetic BERT config -----------------------
VOCAB = 100
VOCAB_PAD = ((VOCAB + 7) // 8) * 8        # 104 (8-sublane aligned rows)
MAX_POS = 16
HIDDEN = 32
N_HEADS = 2
HEAD_DIM = HIDDEN // N_HEADS              # 16
INTERMEDIATE = 64
N_LAYERS = 2
N_CLASSES = 3
SEQ = 8
BATCH = 2
BS = BATCH * SEQ                          # 16
LN_EPS = 1e-12
SLAB_W = 64                               # widest packed weight (INTERMEDIATE)
_INV_SQRT_DH = 1.0 / math.sqrt(HEAD_DIM)
_GELU_C = math.sqrt(2.0 / math.pi)


# --------------------------- in-kernel helpers -----------------------------
def _layernorm(x, gamma, beta):
    mu = jnp.mean(x, axis=-1, keepdims=True)
    var = jnp.mean(jnp.square(x - mu), axis=-1, keepdims=True)
    return (x - mu) * jax.lax.rsqrt(var + LN_EPS) * gamma + beta


def _gelu(x):
    # TODO(synk): HF BERT uses exact erf GELU; tanh approximation kept for a
    # guaranteed Mosaic lowering (numerical drift is negligible for inference).
    return 0.5 * x * (1.0 + jnp.tanh(_GELU_C * (x + 0.044715 * x * x * x)))


# ------------------------- fully fused forward pass -------------------------
def _make_kernel(offsets):
    """offsets: name -> (row_offset, n_rows, n_cols) into the packed weight slab."""

    def kernel(ids_ref, mask_ref, w_ref, o_ref):
        def rd(name):
            r, n, c = offsets[name]
            return w_ref[r:r + n, 0:c]

        # ---- dynamic inputs (loaded once, reused everywhere) ---------------
        mask_add = mask_ref[...]                         # (BS, BS) additive mask
        ids = ids_ref[...]                               # (BS, 1) int32

        # ---- embeddings: one-hot(ids) @ word_emb on the MXU + pos/type + LN
        vocab_iota = jax.lax.broadcasted_iota(jnp.int32, (BS, VOCAB_PAD), 1)
        onehot = (vocab_iota == ids).astype(jnp.float32)          # (BS, VOCAB_PAD)
        tok = jnp.dot(onehot, rd("word_emb"), preferred_element_type=jnp.float32)
        h = _layernorm(tok + rd("pos_type"), rd("emb_g"), rd("emb_b"))

        # ---- encoder layers (static unroll; no concats, no head slices) ----
        for l in range(N_LAYERS):
            attn = rd(f"bo_{l}")                                   # (1, H)
            for hd in range(N_HEADS):
                q = jnp.dot(h, rd(f"wq{hd}_{l}"),
                            preferred_element_type=jnp.float32) + rd(f"bq{hd}_{l}")
                k = jnp.dot(h, rd(f"wk{hd}_{l}"),
                            preferred_element_type=jnp.float32) + rd(f"bk{hd}_{l}")
                v = jnp.dot(h, rd(f"wv{hd}_{l}"),
                            preferred_element_type=jnp.float32) + rd(f"bv{hd}_{l}")
                # one (BS, BS) score matrix for both sequences; the additive
                # mask is block-diagonal over batches and carries key padding.
                s = jax.lax.dot_general(q, k, (((1,), (1,)), ((), ())),
                                        preferred_element_type=jnp.float32)
                s = s * jnp.float32(_INV_SQRT_DH) + mask_add
                s = s - jnp.max(s, axis=-1, keepdims=True)
                p = jnp.exp(s)
                p = p * pl.reciprocal(jnp.sum(p, axis=-1, keepdims=True), approx=True)
                ctx = jnp.dot(p, v, preferred_element_type=jnp.float32)   # (BS, Dh)
                attn = attn + jnp.dot(ctx, rd(f"wo{hd}_{l}"),
                                      preferred_element_type=jnp.float32)
            h = _layernorm(h + attn, rd(f"ln1_g_{l}"), rd(f"ln1_b_{l}"))

            ff = jnp.dot(h, rd(f"w1_{l}"),
                         preferred_element_type=jnp.float32) + rd(f"b1_{l}")
            ff = _gelu(ff)
            ff = jnp.dot(ff, rd(f"w2_{l}"),
                         preferred_element_type=jnp.float32) + rd(f"b2_{l}")
            h = _layernorm(h + ff, rd(f"ln2_g_{l}"), rd(f"ln2_b_{l}"))

        # ---- pooler (CLS rows via constant selector matmul) + classifier ---
        cls = jnp.dot(rd("sel"), h, preferred_element_type=jnp.float32)   # (B, H)
        pooled = jnp.tanh(
            jnp.dot(cls, rd("pool_w"), preferred_element_type=jnp.float32)
            + rd("pool_b"))
        # nn.Dropout(p=0.5) is identity at inference (eval mode).
        logits = jnp.dot(pooled, rd("out_w"),
                         preferred_element_type=jnp.float32) + rd("out_b")
        o_ref[...] = logits                                               # (B, C)

    return kernel


# ------------------------------ host-side glue ------------------------------
def pack_params(params):
    """Pack every weight into ONE fp32 slab (rows 8-aligned, SLAB_W lanes).

    Returns (slab, offsets) where offsets[name] = (row, n_rows, n_cols) are
    static Python ints the kernel uses for in-slab static slices.
    """
    entries = []

    def add(name, arr):
        arr = jnp.asarray(arr, jnp.float32)
        assert arr.ndim == 2 and arr.shape[1] <= SLAB_W
        entries.append((name, arr))

    wemb = jnp.zeros((VOCAB_PAD, HIDDEN), jnp.float32).at[:VOCAB].set(params["word_emb"])
    add("word_emb", wemb)
    pos_type = jnp.tile(params["pos_emb"][:SEQ] + params["type_emb"][0][None, :],
                        (BATCH, 1))
    add("pos_type", pos_type)                                      # (BS, H)
    add("emb_g", params["emb_ln_g"][None, :])
    add("emb_b", params["emb_ln_b"][None, :])

    sel = jnp.zeros((BATCH, BS), jnp.float32)                      # CLS selector
    for b in range(BATCH):
        sel = sel.at[b, b * SEQ].set(1.0)
    add("sel", sel)

    for l, lp in enumerate(params["layers"]):
        for hd in range(N_HEADS):
            c0 = hd * HEAD_DIM
            add(f"wq{hd}_{l}", lp["wq"][:, c0:c0 + HEAD_DIM])
            add(f"bq{hd}_{l}", lp["bq"][None, c0:c0 + HEAD_DIM])
            add(f"wk{hd}_{l}", lp["wk"][:, c0:c0 + HEAD_DIM])
            add(f"bk{hd}_{l}", lp["bk"][None, c0:c0 + HEAD_DIM])
            add(f"wv{hd}_{l}", lp["wv"][:, c0:c0 + HEAD_DIM])
            add(f"bv{hd}_{l}", lp["bv"][None, c0:c0 + HEAD_DIM])
            add(f"wo{hd}_{l}", lp["wo"][c0:c0 + HEAD_DIM, :])      # (Dh, H)
        add(f"bo_{l}", lp["bo"][None, :])
        add(f"ln1_g_{l}", lp["ln1_g"][None, :])
        add(f"ln1_b_{l}", lp["ln1_b"][None, :])
        add(f"w1_{l}", lp["w1"])
        add(f"b1_{l}", lp["b1"][None, :])
        add(f"w2_{l}", lp["w2"])
        add(f"b2_{l}", lp["b2"][None, :])
        add(f"ln2_g_{l}", lp["ln2_g"][None, :])
        add(f"ln2_b_{l}", lp["ln2_b"][None, :])

    add("pool_w", params["pool_w"])
    add("pool_b", params["pool_b"][None, :])
    add("out_w", params["out_w"])
    add("out_b", params["out_b"][None, :])

    blocks, offsets, row = [], {}, 0
    for name, arr in entries:
        r, c = arr.shape
        rp = ((r + 7) // 8) * 8                                    # 8-sublane align
        block = jnp.zeros((rp, SLAB_W), jnp.float32).at[:r, :c].set(arr)
        blocks.append(block)
        offsets[name] = (row, r, c)
        row += rp
    slab = jnp.concatenate(blocks, axis=0)                         # (~1072, 64) fp32
    return slab, offsets


def build_forward(offsets):
    kernel = _make_kernel(offsets)
    vmem = pl.BlockSpec(memory_space=pltpu.MemorySpace.VMEM)
    row_batch = jnp.arange(BS, dtype=jnp.int32) // SEQ             # trace constant

    def forward(input_ids, attention_mask, slab):
        ids_2d = input_ids.reshape(BS, 1).astype(jnp.int32)
        # (BS, BS) additive mask: block-diagonal over batches + key padding.
        key_valid = attention_mask.reshape(1, BS).astype(jnp.float32) > 0.5
        same_batch = row_batch[:, None] == row_batch[None, :]
        mask_add = jnp.where(jnp.logical_and(same_batch, key_valid),
                             0.0, -1e9).astype(jnp.float32)
        return pl.pallas_call(
            kernel,
            out_shape=jax.ShapeDtypeStruct((BATCH, N_CLASSES), jnp.float32),
            in_specs=[vmem, vmem, vmem],     # ids, mask, packed weight slab
            out_specs=vmem,
        )(ids_2d, mask_add, slab)

    return jax.jit(forward)


# ----------------------------- parameter init ------------------------------
def init_params(key):
    def nrm(k, shape, scale=0.02):
        return (scale * jax.random.normal(k, shape)).astype(jnp.float32)

    keys = iter(jax.random.split(key, 200))
    params = {
        "word_emb": nrm(next(keys), (VOCAB, HIDDEN)),
        "pos_emb": nrm(next(keys), (MAX_POS, HIDDEN)),
        "type_emb": nrm(next(keys), (2, HIDDEN)),
        "emb_ln_g": jnp.ones((HIDDEN,), jnp.float32),
        "emb_ln_b": jnp.zeros((HIDDEN,), jnp.float32),
        "layers": [],
        "pool_w": nrm(next(keys), (HIDDEN, HIDDEN)),
        "pool_b": jnp.zeros((HIDDEN,), jnp.float32),
        "out_w": nrm(next(keys), (HIDDEN, N_CLASSES)),
        "out_b": jnp.zeros((N_CLASSES,), jnp.float32),
    }
    for _ in range(N_LAYERS):
        params["layers"].append({
            "wq": nrm(next(keys), (HIDDEN, HIDDEN)), "bq": jnp.zeros((HIDDEN,), jnp.float32),
            "wk": nrm(next(keys), (HIDDEN, HIDDEN)), "bk": jnp.zeros((HIDDEN,), jnp.float32),
            "wv": nrm(next(keys), (HIDDEN, HIDDEN)), "bv": jnp.zeros((HIDDEN,), jnp.float32),
            "wo": nrm(next(keys), (HIDDEN, HIDDEN)), "bo": jnp.zeros((HIDDEN,), jnp.float32),
            "ln1_g": jnp.ones((HIDDEN,), jnp.float32), "ln1_b": jnp.zeros((HIDDEN,), jnp.float32),
            "w1": nrm(next(keys), (HIDDEN, INTERMEDIATE)), "b1": jnp.zeros((INTERMEDIATE,), jnp.float32),
            "w2": nrm(next(keys), (INTERMEDIATE, HIDDEN)), "b2": jnp.zeros((HIDDEN,), jnp.float32),
            "ln2_g": jnp.ones((HIDDEN,), jnp.float32), "ln2_b": jnp.zeros((HIDDEN,), jnp.float32),
        })
    return params


# ---------------------------------- main ------------------------------------
if __name__ == "__main__":
    key = jax.random.PRNGKey(0)
    k_ids, k_params = jax.random.split(key)

    input_ids = jax.random.randint(k_ids, (BATCH, SEQ), 0, VOCAB, dtype=jnp.int32)
    attention_mask = jnp.ones((BATCH, SEQ), dtype=jnp.int32)
    attention_mask = attention_mask.at[1, SEQ - 2:].set(0)   # some padding in batch 1

    params = init_params(k_params)
    slab, offsets = pack_params(params)

    forward = build_forward(offsets)
    logits = forward(input_ids, attention_mask, slab)
    logits = jax.block_until_ready(logits)

    assert logits.shape == (BATCH, N_CLASSES)
    assert bool(jnp.all(jnp.isfinite(logits)))
    print("KERNEL_OK")
</pallas_src>

<mosaic_0001>
module attributes {stable_mosaic.version = 11 : i64} {
  func.func @kernel(%arg0: memref<16x1xi32, #tpu.memory_space<vmem>>, %arg1: memref<16x16xf32, #tpu.memory_space<vmem>>, %arg2: memref<1072x64xf32, #tpu.memory_space<vmem>>, %arg3: memref<2x3xf32, #tpu.memory_space<vmem>>) attributes {dimension_semantics = [], scalar_prefetch = 0 : i64, scratch_operands = 0 : i64, tpu.core_type = #tpu.core_type<tc>} {
    %c0 = arith.constant 0 : index
    %c0_0 = arith.constant 0 : index
    %0 = vector.load %arg1[%c0, %c0_0] : memref<16x16xf32, #tpu.memory_space<vmem>>, vector<16x16xf32>
    %c0_1 = arith.constant 0 : index
    %c0_2 = arith.constant 0 : index
    %1 = vector.load %arg0[%c0_1, %c0_2] : memref<16x1xi32, #tpu.memory_space<vmem>>, vector<16x1xi32>
    %2 = tpu.iota {dimensions = array<i32: 1>} : vector<16x104xi32>
    %3 = vector.broadcast %1 : vector<16x1xi32> to vector<16x104xi32>
    %4 = arith.cmpi eq, %2, %3 : vector<16x104xi32>
    %5 = arith.extui %4 : vector<16x104xi1> to vector<16x104xi32>
    %6 = arith.sitofp %5 : vector<16x104xi32> to vector<16x104xf32>
    %c0_3 = arith.constant 0 : index
    %c0_4 = arith.constant 0 : index
    %7 = vector.load %arg2[%c0_3, %c0_4] : memref<1072x64xf32, #tpu.memory_space<vmem>>, vector<104x32xf32>
    %cst = arith.constant dense<0.000000e+00> : vector<16x32xf32>
    %8 = tpu.matmul %6, %7, %cst {dimension_numbers = #tpu.dot_dimension_numbers<[1], [0], [0], [1], [0, 0, 1, 1], [], []>} : vector<16x104xf32>, vector<104x32xf32>, vector<16x32xf32> -> vector<16x32xf32>
    %c104 = arith.constant 104 : index
    %c0_5 = arith.constant 0 : index
    %9 = vector.load %arg2[%c104, %c0_5] : memref<1072x64xf32, #tpu.memory_space<vmem>>, vector<16x32xf32>
    %10 = arith.addf %8, %9 : vector<16x32xf32>
    %c120 = arith.constant 120 : index
    %c0_6 = arith.constant 0 : index
    %11 = vector.load %arg2[%c120, %c0_6] : memref<1072x64xf32, #tpu.memory_space<vmem>>, vector<1x32xf32>
    %c128 = arith.constant 128 : index
    %c0_7 = arith.constant 0 : index
    %12 = vector.load %arg2[%c128, %c0_7] : memref<1072x64xf32, #tpu.memory_space<vmem>>, vector<1x32xf32>
    %cst_8 = arith.constant dense<0.000000e+00> : vector<16xf32>
    %13 = vector.multi_reduction <add>, %10, %cst_8 [1] : vector<16x32xf32> to vector<16xf32>
    %14 = vector.shape_cast %13 : vector<16xf32> to vector<16x1xf32>
    %cst_9 = arith.constant 3.200000e+01 : f32
    %15 = vector.broadcast %cst_9 : f32 to vector<16x1xf32>
    %16 = arith.divf %14, %15 : vector<16x1xf32>
    %17 = vector.broadcast %16 : vector<16x1xf32> to vector<16x32xf32>
    %18 = arith.subf %10, %17 : vector<16x32xf32>
    %19 = arith.mulf %18, %18 : vector<16x32xf32>
    %cst_10 = arith.constant dense<0.000000e+00> : vector<16xf32>
    %20 = vector.multi_reduction <add>, %19, %cst_10 [1] : vector<16x32xf32> to vector<16xf32>
    %21 = vector.shape_cast %20 : vector<16xf32> to vector<16x1xf32>
    %cst_11 = arith.constant 3.200000e+01 : f32
    %22 = vector.broadcast %cst_11 : f32 to vector<16x1xf32>
    %23 = arith.divf %21, %22 : vector<16x1xf32>
    %24 = vector.broadcast %16 : vector<16x1xf32> to vector<16x32xf32>
    %25 = arith.subf %10, %24 : vector<16x32xf32>
    %cst_12 = arith.constant 9.99999996E-13 : f32
    %26 = vector.broadcast %cst_12 : f32 to vector<16x1xf32>
    %27 = arith.addf %23, %26 : vector<16x1xf32>
    %28 = math.rsqrt %27 : vector<16x1xf32>
    %29 = vector.broadcast %28 : vector<16x1xf32> to vector<16x32xf32>
    %30 = arith.mulf %25, %29 : vector<16x32xf32>
    %31 = vector.broadcast %11 : vector<1x32xf32> to vector<16x32xf32>
    %32 = arith.mulf %30, %31 : vector<16x32xf32>
    %33 = vector.broadcast %12 : vector<1x32xf32> to vector<16x32xf32>
    %34 = arith.addf %32, %33 : vector<16x32xf32>
    %c416 = arith.constant 416 : index
    %c0_13 = arith.constant 0 : index
    %35 = vector.load %arg2[%c416, %c0_13] : memref<1072x64xf32, #tpu.memory_space<vmem>>, vector<1x32xf32>
    %c144 = arith.constant 144 : index
    %c0_14 = arith.constant 0 : index
    %36 = vector.load %arg2[%c144, %c0_14] : memref<1072x64xf32, #tpu.memory_space<vmem>>, vector<32x16xf32>
    %cst_15 = arith.constant dense<0.000000e+00> : vector<16x16xf32>
    %37 = tpu.matmul %34, %36, %cst_15 {dimension_numbers = #tpu.dot_dimension_numbers<[1], [0], [0], [1], [0, 0, 1, 1], [], []>} : vector<16x32xf32>, vector<32x16xf32>, vector<16x16xf32> -> vector<16x16xf32>
    %c176 = arith.constant 176 : index
    %c0_16 = arith.constant 0 : index
    %38 = vector.load %arg2[%c176, %c0_16] : memref<1072x64xf32, #tpu.memory_space<vmem>>, vector<1x16xf32>
    %39 = vector.broadcast %38 : vector<1x16xf32> to vector<16x16xf32>
    %40 = arith.addf %37, %39 : vector<16x16xf32>
    %c184 = arith.constant 184 : index
    %c0_17 = arith.constant 0 : index
    %41 = vector.load %arg2[%c184, %c0_17] : memref<1072x64xf32, #tpu.memory_space<vmem>>, vector<32x16xf32>
    %cst_18 = arith.constant dense<0.000000e+00> : vector<16x16xf32>
    %42 = tpu.matmul %34, %41, %cst_18 {dimension_numbers = #tpu.dot_dimension_numbers<[1], [0], [0], [1], [0, 0, 1, 1], [], []>} : vector<16x32xf32>, vector<32x16xf32>, vector<16x16xf32> -> vector<16x16xf32>
    %c216 = arith.constant 216 : index
    %c0_19 = arith.constant 0 : index
    %43 = vector.load %arg2[%c216, %c0_19] : memref<1072x64xf32, #tpu.memory_space<vmem>>, vector<1x16xf32>
    %44 = vector.broadcast %43 : vector<1x16xf32> to vector<16x16xf32>
    %45 = arith.addf %42, %44 : vector<16x16xf32>
    %c224 = arith.constant 224 : index
    %c0_20 = arith.constant 0 : index
    %46 = vector.load %arg2[%c224, %c0_20] : memref<1072x64xf32, #tpu.memory_space<vmem>>, vector<32x16xf32>
    %cst_21 = arith.constant dense<0.000000e+00> : vector<16x16xf32>
    %47 = tpu.matmul %34, %46, %cst_21 {dimension_numbers = #tpu.dot_dimension_numbers<[1], [0], [0], [1], [0, 0, 1, 1], [], []>} : vector<16x32xf32>, vector<32x16xf32>, vector<16x16xf32> -> vector<16x16xf32>
    %c256 = arith.constant 256 : index
    %c0_22 = arith.constant 0 : index
    %48 = vector.load %arg2[%c256, %c0_22] : memref<1072x64xf32, #tpu.memory_space<vmem>>, vector<1x16xf32>
    %49 = vector.broadcast %48 : vector<1x16xf32> to vector<16x16xf32>
    %50 = arith.addf %47, %49 : vector<16x16xf32>
    %cst_23 = arith.constant dense<0.000000e+00> : vector<16x16xf32>
    %51 = tpu.matmul %40, %45, %cst_23 {dimension_numbers = #tpu.dot_dimension_numbers<[1], [1], [0], [0], [0, 0, 1, 0], [], []>} : vector<16x16xf32>, vector<16x16xf32>, vector<16x16xf32> -> vector<16x16xf32>
    %cst_24 = arith.constant 2.500000e-01 : f32
    %52 = vector.broadcast %cst_24 : f32 to vector<16x16xf32>
    %53 = arith.mulf %51, %52 : vector<16x16xf32>
    %54 = arith.addf %53, %0 : vector<16x16xf32>
    %cst_25 = arith.constant dense<0xFF800000> : vector<16xf32>
    %55 = vector.multi_reduction <maximumf>, %54, %cst_25 [1] : vector<16x16xf32> to vector<16xf32>
    %56 = vector.shape_cast %55 : vector<16xf32> to vector<16x1xf32>
    %57 = vector.broadcast %56 : vector<16x1xf32> to vector<16x16xf32>
    %58 = arith.subf %54, %57 : vector<16x16xf32>
    %59 = math.exp %58 : vector<16x16xf32>
    %cst_26 = arith.constant dense<0.000000e+00> : vector<16xf32>
    %60 = vector.multi_reduction <add>, %59, %cst_26 [1] : vector<16x16xf32> to vector<16xf32>
    %61 = vector.shape_cast %60 : vector<16xf32> to vector<16x1xf32>
    %62 = tpu.reciprocal %61 {approx = true} : vector<16x1xf32> -> vector<16x1xf32>
    %63 = vector.broadcast %62 : vector<16x1xf32> to vector<16x16xf32>
    %64 = arith.mulf %59, %63 : vector<16x16xf32>
    %cst_27 = arith.constant dense<0.000000e+00> : vector<16x16xf32>
    %65 = tpu.matmul %64, %50, %cst_27 {dimension_numbers = #tpu.dot_dimension_numbers<[1], [0], [0], [1], [0, 0, 1, 1], [], []>} : vector<16x16xf32>, vector<16x16xf32>, vector<16x16xf32> -> vector<16x16xf32>
    %c264 = arith.constant 264 : index
    %c0_28 = arith.constant 0 : index
    %66 = vector.load %arg2[%c264, %c0_28] : memref<1072x64xf32, #tpu.memory_space<vmem>>, vector<16x32xf32>
    %cst_29 = arith.constant dense<0.000000e+00> : vector<16x32xf32>
    %67 = tpu.matmul %65, %66, %cst_29 {dimension_numbers = #tpu.dot_dimension_numbers<[1], [0], [0], [1], [0, 0, 1, 1], [], []>} : vector<16x16xf32>, vector<16x32xf32>, vector<16x32xf32> -> vector<16x32xf32>
    %68 = vector.broadcast %35 : vector<1x32xf32> to vector<16x32xf32>
    %69 = arith.addf %68, %67 : vector<16x32xf32>
    %c280 = arith.constant 280 : index
    %c0_30 = arith.constant 0 : index
    %70 = vector.load %arg2[%c280, %c0_30] : memref<1072x64xf32, #tpu.memory_space<vmem>>, vector<32x16xf32>
    %cst_31 = arith.constant dense<0.000000e+00> : vector<16x16xf32>
    %71 = tpu.matmul %34, %70, %cst_31 {dimension_numbers = #tpu.dot_dimension_numbers<[1], [0], [0], [1], [0, 0, 1, 1], [], []>} : vector<16x32xf32>, vector<32x16xf32>, vector<16x16xf32> -> vector<16x16xf32>
    %c312 = arith.constant 312 : index
    %c0_32 = arith.constant 0 : index
    %72 = vector.load %arg2[%c312, %c0_32] : memref<1072x64xf32, #tpu.memory_space<vmem>>, vector<1x16xf32>
    %73 = vector.broadcast %72 : vector<1x16xf32> to vector<16x16xf32>
    %74 = arith.addf %71, %73 : vector<16x16xf32>
    %c320 = arith.constant 320 : index
    %c0_33 = arith.constant 0 : index
    %75 = vector.load %arg2[%c320, %c0_33] : memref<1072x64xf32, #tpu.memory_space<vmem>>, vector<32x16xf32>
    %cst_34 = arith.constant dense<0.000000e+00> : vector<16x16xf32>
    %76 = tpu.matmul %34, %75, %cst_34 {dimension_numbers = #tpu.dot_dimension_numbers<[1], [0], [0], [1], [0, 0, 1, 1], [], []>} : vector<16x32xf32>, vector<32x16xf32>, vector<16x16xf32> -> vector<16x16xf32>
    %c352 = arith.constant 352 : index
    %c0_35 = arith.constant 0 : index
    %77 = vector.load %arg2[%c352, %c0_35] : memref<1072x64xf32, #tpu.memory_space<vmem>>, vector<1x16xf32>
    %78 = vector.broadcast %77 : vector<1x16xf32> to vector<16x16xf32>
    %79 = arith.addf %76, %78 : vector<16x16xf32>
    %c360 = arith.constant 360 : index
    %c0_36 = arith.constant 0 : index
    %80 = vector.load %arg2[%c360, %c0_36] : memref<1072x64xf32, #tpu.memory_space<vmem>>, vector<32x16xf32>
    %cst_37 = arith.constant dense<0.000000e+00> : vector<16x16xf32>
    %81 = tpu.matmul %34, %80, %cst_37 {dimension_numbers = #tpu.dot_dimension_numbers<[1], [0], [0], [1], [0, 0, 1, 1], [], []>} : vector<16x32xf32>, vector<32x16xf32>, vector<16x16xf32> -> vector<16x16xf32>
    %c392 = arith.constant 392 : index
    %c0_38 = arith.constant 0 : index
    %82 = vector.load %arg2[%c392, %c0_38] : memref<1072x64xf32, #tpu.memory_space<vmem>>, vector<1x16xf32>
    %83 = vector.broadcast %82 : vector<1x16xf32> to vector<16x16xf32>
    %84 = arith.addf %81, %83 : vector<16x16xf32>
    %cst_39 = arith.constant dense<0.000000e+00> : vector<16x16xf32>
    %85 = tpu.matmul %74, %79, %cst_39 {dimension_numbers = #tpu.dot_dimension_numbers<[1], [1], [0], [0], [0, 0, 1, 0], [], []>} : vector<16x16xf32>, vector<16x16xf32>, vector<16x16xf32> -> vector<16x16xf32>
    %cst_40 = arith.constant 2.500000e-01 : f32
    %86 = vector.broadcast %cst_40 : f32 to vector<16x16xf32>
    %87 = arith.mulf %85, %86 : vector<16x16xf32>
    %88 = arith.addf %87, %0 : vector<16x16xf32>
    %cst_41 = arith.constant dense<0xFF800000> : vector<16xf32>
    %89 = vector.multi_reduction <maximumf>, %88, %cst_41 [1] : vector<16x16xf32> to vector<16xf32>
    %90 = vector.shape_cast %89 : vector<16xf32> to vector<16x1xf32>
    %91 = vector.broadcast %90 : vector<16x1xf32> to vector<16x16xf32>
    %92 = arith.subf %88, %91 : vector<16x16xf32>
    %93 = math.exp %92 : vector<16x16xf32>
    %cst_42 = arith.constant dense<0.000000e+00> : vector<16xf32>
    %94 = vector.multi_reduction <add>, %93, %cst_42 [1] : vector<16x16xf32> to vector<16xf32>
    %95 = vector.shape_cast %94 : vector<16xf32> to vector<16x1xf32>
    %96 = tpu.reciprocal %95 {approx = true} : vector<16x1xf32> -> vector<16x1xf32>
    %97 = vector.broadcast %96 : vector<16x1xf32> to vector<16x16xf32>
    %98 = arith.mulf %93, %97 : vector<16x16xf32>
    %cst_43 = arith.constant dense<0.000000e+00> : vector<16x16xf32>
    %99 = tpu.matmul %98, %84, %cst_43 {dimension_numbers = #tpu.dot_dimension_numbers<[1], [0], [0], [1], [0, 0, 1, 1], [], []>} : vector<16x16xf32>, vector<16x16xf32>, vector<16x16xf32> -> vector<16x16xf32>
    %c400 = arith.constant 400 : index
    %c0_44 = arith.constant 0 : index
    %100 = vector.load %arg2[%c400, %c0_44] : memref<1072x64xf32, #tpu.memory_space<vmem>>, vector<16x32xf32>
    %cst_45 = arith.constant dense<0.000000e+00> : vector<16x32xf32>
    %101 = tpu.matmul %99, %100, %cst_45 {dimension_numbers = #tpu.dot_dimension_numbers<[1], [0], [0], [1], [0, 0, 1, 1], [], []>} : vector<16x16xf32>, vector<16x32xf32>, vector<16x32xf32> -> vector<16x32xf32>
    %102 = arith.addf %69, %101 : vector<16x32xf32>
    %103 = arith.addf %34, %102 : vector<16x32xf32>
    %c424 = arith.constant 424 : index
    %c0_46 = arith.constant 0 : index
    %104 = vector.load %arg2[%c424, %c0_46] : memref<1072x64xf32, #tpu.memory_space<vmem>>, vector<1x32xf32>
    %c432 = arith.constant 432 : index
    %c0_47 = arith.constant 0 : index
    %105 = vector.load %arg2[%c432, %c0_47] : memref<1072x64xf32, #tpu.memory_space<vmem>>, vector<1x32xf32>
    %cst_48 = arith.constant dense<0.000000e+00> : vector<16xf32>
    %106 = vector.multi_reduction <add>, %103, %cst_48 [1] : vector<16x32xf32> to vector<16xf32>
    %107 = vector.shape_cast %106 : vector<16xf32> to vector<16x1xf32>
    %cst_49 = arith.constant 3.200000e+01 : f32
    %108 = vector.broadcast %cst_49 : f32 to vector<16x1xf32>
    %109 = arith.divf %107, %108 : vector<16x1xf32>
    %110 = vector.broadcast %109 : vector<16x1xf32> to vector<16x32xf32>
    %111 = arith.subf %103, %110 : vector<16x32xf32>
    %112 = arith.mulf %111, %111 : vector<16x32xf32>
    %cst_50 = arith.constant dense<0.000000e+00> : vector<16xf32>
    %113 = vector.multi_reduction <add>, %112, %cst_50 [1] : vector<16x32xf32> to vector<16xf32>
    %114 = vector.shape_cast %113 : vector<16xf32> to vector<16x1xf32>
    %cst_51 = arith.constant 3.200000e+01 : f32
    %115 = vector.broadcast %cst_51 : f32 to vector<16x1xf32>
    %116 = arith.divf %114, %115 : vector<16x1xf32>
    %117 = vector.broadcast %109 : vector<16x1xf32> to vector<16x32xf32>
    %118 = arith.subf %103, %117 : vector<16x32xf32>
    %cst_52 = arith.constant 9.99999996E-13 : f32
    %119 = vector.broadcast %cst_52 : f32 to vector<16x1xf32>
    %120 = arith.addf %116, %119 : vector<16x1xf32>
    %121 = math.rsqrt %120 : vector<16x1xf32>
    %122 = vector.broadcast %121 : vector<16x1xf32> to vector<16x32xf32>
    %123 = arith.mulf %118, %122 : vector<16x32xf32>
    %124 = vector.broadcast %104 : vector<1x32xf32> to vector<16x32xf32>
    %125 = arith.mulf %123, %124 : vector<16x32xf32>
    %126 = vector.broadcast %105 : vector<1x32xf32> to vector<16x32xf32>
    %127 = arith.addf %125, %126 : vector<16x32xf32>
    %c440 = arith.constant 440 : index
    %c0_53 = arith.constant 0 : index
    %128 = vector.load %arg2[%c440, %c0_53] : memref<1072x64xf32, #tpu.memory_space<vmem>>, vector<32x64xf32>
    %cst_54 = arith.constant dense<0.000000e+00> : vector<16x64xf32>
    %129 = tpu.matmul %127, %128, %cst_54 {dimension_numbers = #tpu.dot_dimension_numbers<[1], [0], [0], [1], [0, 0, 1, 1], [], []>} : vector<16x32xf32>, vector<32x64xf32>, vector<16x64xf32> -> vector<16x64xf32>
    %c472 = arith.constant 472 : index
    %c0_55 = arith.constant 0 : index
    %130 = vector.load %arg2[%c472, %c0_55] : memref<1072x64xf32, #tpu.memory_space<vmem>>, vector<1x64xf32>
    %131 = vector.broadcast %130 : vector<1x64xf32> to vector<16x64xf32>
    %132 = arith.addf %129, %131 : vector<16x64xf32>
    %cst_56 = arith.constant 5.000000e-01 : f32
    %133 = vector.broadcast %cst_56 : f32 to vector<16x64xf32>
    %134 = arith.mulf %133, %132 : vector<16x64xf32>
    %cst_57 = arith.constant 4.471500e-02 : f32
    %135 = vector.broadcast %cst_57 : f32 to vector<16x64xf32>
    %136 = arith.mulf %135, %132 : vector<16x64xf32>
    %137 = arith.mulf %136, %132 : vector<16x64xf32>
    %138 = arith.mulf %137, %132 : vector<16x64xf32>
    %139 = arith.addf %132, %138 : vector<16x64xf32>
    %cst_58 = arith.constant 0.797884583 : f32
    %140 = vector.broadcast %cst_58 : f32 to vector<16x64xf32>
    %141 = arith.mulf %140, %139 : vector<16x64xf32>
    %142 = math.tanh %141 : vector<16x64xf32>
    %cst_59 = arith.constant 1.000000e+00 : f32
    %143 = vector.broadcast %cst_59 : f32 to vector<16x64xf32>
    %144 = arith.addf %143, %142 : vector<16x64xf32>
    %145 = arith.mulf %134, %144 : vector<16x64xf32>
    %c480 = arith.constant 480 : index
    %c0_60 = arith.constant 0 : index
    %146 = vector.load %arg2[%c480, %c0_60] : memref<1072x64xf32, #tpu.memory_space<vmem>>, vector<64x32xf32>
    %cst_61 = arith.constant dense<0.000000e+00> : vector<16x32xf32>
    %147 = tpu.matmul %145, %146, %cst_61 {dimension_numbers = #tpu.dot_dimension_numbers<[1], [0], [0], [1], [0, 0, 1, 1], [], []>} : vector<16x64xf32>, vector<64x32xf32>, vector<16x32xf32> -> vector<16x32xf32>
    %c544 = arith.constant 544 : index
    %c0_62 = arith.constant 0 : index
    %148 = vector.load %arg2[%c544, %c0_62] : memref<1072x64xf32, #tpu.memory_space<vmem>>, vector<1x32xf32>
    %149 = vector.broadcast %148 : vector<1x32xf32> to vector<16x32xf32>
    %150 = arith.addf %147, %149 : vector<16x32xf32>
    %151 = arith.addf %127, %150 : vector<16x32xf32>
    %c552 = arith.constant 552 : index
    %c0_63 = arith.constant 0 : index
    %152 = vector.load %arg2[%c552, %c0_63] : memref<1072x64xf32, #tpu.memory_space<vmem>>, vector<1x32xf32>
    %c560 = arith.constant 560 : index
    %c0_64 = arith.constant 0 : index
    %153 = vector.load %arg2[%c560, %c0_64] : memref<1072x64xf32, #tpu.memory_space<vmem>>, vector<1x32xf32>
    %cst_65 = arith.constant dense<0.000000e+00> : vector<16xf32>
    %154 = vector.multi_reduction <add>, %151, %cst_65 [1] : vector<16x32xf32> to vector<16xf32>
    %155 = vector.shape_cast %154 : vector<16xf32> to vector<16x1xf32>
    %cst_66 = arith.constant 3.200000e+01 : f32
    %156 = vector.broadcast %cst_66 : f32 to vector<16x1xf32>
    %157 = arith.divf %155, %156 : vector<16x1xf32>
    %158 = vector.broadcast %157 : vector<16x1xf32> to vector<16x32xf32>
    %159 = arith.subf %151, %158 : vector<16x32xf32>
    %160 = arith.mulf %159, %159 : vector<16x32xf32>
    %cst_67 = arith.constant dense<0.000000e+00> : vector<16xf32>
    %161 = vector.multi_reduction <add>, %160, %cst_67 [1] : vector<16x32xf32> to vector<16xf32>
    %162 = vector.shape_cast %161 : vector<16xf32> to vector<16x1xf32>
    %cst_68 = arith.constant 3.200000e+01 : f32
    %163 = vector.broadcast %cst_68 : f32 to vector<16x1xf32>
    %164 = arith.divf %162, %163 : vector<16x1xf32>
    %165 = vector.broadcast %157 : vector<16x1xf32> to vector<16x32xf32>
    %166 = arith.subf %151, %165 : vector<16x32xf32>
    %cst_69 = arith.constant 9.99999996E-13 : f32
    %167 = vector.broadcast %cst_69 : f32 to vector<16x1xf32>
    %168 = arith.addf %164, %167 : vector<16x1xf32>
    %169 = math.rsqrt %168 : vector<16x1xf32>
    %170 = vector.broadcast %169 : vector<16x1xf32> to vector<16x32xf32>
    %171 = arith.mulf %166, %170 : vector<16x32xf32>
    %172 = vector.broadcast %152 : vector<1x32xf32> to vector<16x32xf32>
    %173 = arith.mulf %171, %172 : vector<16x32xf32>
    %174 = vector.broadcast %153 : vector<1x32xf32> to vector<16x32xf32>
    %175 = arith.addf %173, %174 : vector<16x32xf32>
    %c840 = arith.constant 840 : index
    %c0_70 = arith.constant 0 : index
    %176 = vector.load %arg2[%c840, %c0_70] : memref<1072x64xf32, #tpu.memory_space<vmem>>, vector<1x32xf32>
    %c568 = arith.constant 568 : index
    %c0_71 = arith.constant 0 : index
    %177 = vector.load %arg2[%c568, %c0_71] : memref<1072x64xf32, #tpu.memory_space<vmem>>, vector<32x16xf32>
    %cst_72 = arith.constant dense<0.000000e+00> : vector<16x16xf32>
    %178 = tpu.matmul %175, %177, %cst_72 {dimension_numbers = #tpu.dot_dimension_numbers<[1], [0], [0], [1], [0, 0, 1, 1], [], []>} : vector<16x32xf32>, vector<32x16xf32>, vector<16x16xf32> -> vector<16x16xf32>
    %c600 = arith.constant 600 : index
    %c0_73 = arith.constant 0 : index
    %179 = vector.load %arg2[%c600, %c0_73] : memref<1072x64xf32, #tpu.memory_space<vmem>>, vector<1x16xf32>
    %180 = vector.broadcast %179 : vector<1x16xf32> to vector<16x16xf32>
    %181 = arith.addf %178, %180 : vector<16x16xf32>
    %c608 = arith.constant 608 : index
    %c0_74 = arith.constant 0 : index
    %182 = vector.load %arg2[%c608, %c0_74] : memref<1072x64xf32, #tpu.memory_space<vmem>>, vector<32x16xf32>
    %cst_75 = arith.constant dense<0.000000e+00> : vector<16x16xf32>
    %183 = tpu.matmul %175, %182, %cst_75 {dimension_numbers = #tpu.dot_dimension_numbers<[1], [0], [0], [1], [0, 0, 1, 1], [], []>} : vector<16x32xf32>, vector<32x16xf32>, vector<16x16xf32> -> vector<16x16xf32>
    %c640 = arith.constant 640 : index
    %c0_76 = arith.constant 0 : index
    %184 = vector.load %arg2[%c640, %c0_76] : memref<1072x64xf32, #tpu.memory_space<vmem>>, vector<1x16xf32>
    %185 = vector.broadcast %184 : vector<1x16xf32> to vector<16x16xf32>
    %186 = arith.addf %183, %185 : vector<16x16xf32>
    %c648 = arith.constant 648 : index
    %c0_77 = arith.constant 0 : index
    %187 = vector.load %arg2[%c648, %c0_77] : memref<1072x64xf32, #tpu.memory_space<vmem>>, vector<32x16xf32>
    %cst_78 = arith.constant dense<0.000000e+00> : vector<16x16xf32>
    %188 = tpu.matmul %175, %187, %cst_78 {dimension_numbers = #tpu.dot_dimension_numbers<[1], [0], [0], [1], [0, 0, 1, 1], [], []>} : vector<16x32xf32>, vector<32x16xf32>, vector<16x16xf32> -> vector<16x16xf32>
    %c680 = arith.constant 680 : index
    %c0_79 = arith.constant 0 : index
    %189 = vector.load %arg2[%c680, %c0_79] : memref<1072x64xf32, #tpu.memory_space<vmem>>, vector<1x16xf32>
    %190 = vector.broadcast %189 : vector<1x16xf32> to vector<16x16xf32>
    %191 = arith.addf %188, %190 : vector<16x16xf32>
    %cst_80 = arith.constant dense<0.000000e+00> : vector<16x16xf32>
    %192 = tpu.matmul %181, %186, %cst_80 {dimension_numbers = #tpu.dot_dimension_numbers<[1], [1], [0], [0], [0, 0, 1, 0], [], []>} : vector<16x16xf32>, vector<16x16xf32>, vector<16x16xf32> -> vector<16x16xf32>
    %cst_81 = arith.constant 2.500000e-01 : f32
    %193 = vector.broadcast %cst_81 : f32 to vector<16x16xf32>
    %194 = arith.mulf %192, %193 : vector<16x16xf32>
    %195 = arith.addf %194, %0 : vector<16x16xf32>
    %cst_82 = arith.constant dense<0xFF800000> : vector<16xf32>
    %196 = vector.multi_reduction <maximumf>, %195, %cst_82 [1] : vector<16x16xf32> to vector<16xf32>
    %197 = vector.shape_cast %196 : vector<16xf32> to vector<16x1xf32>
    %198 = vector.broadcast %197 : vector<16x1xf32> to vector<16x16xf32>
    %199 = arith.subf %195, %198 : vector<16x16xf32>
    %200 = math.exp %199 : vector<16x16xf32>
    %cst_83 = arith.constant dense<0.000000e+00> : vector<16xf32>
    %201 = vector.multi_reduction <add>, %200, %cst_83 [1] : vector<16x16xf32> to vector<16xf32>
    %202 = vector.shape_cast %201 : vector<16xf32> to vector<16x1xf32>
    %203 = tpu.reciprocal %202 {approx = true} : vector<16x1xf32> -> vector<16x1xf32>
    %204 = vector.broadcast %203 : vector<16x1xf32> to vector<16x16xf32>
    %205 = arith.mulf %200, %204 : vector<16x16xf32>
    %cst_84 = arith.constant dense<0.000000e+00> : vector<16x16xf32>
    %206 = tpu.matmul %205, %191, %cst_84 {dimension_numbers = #tpu.dot_dimension_numbers<[1], [0], [0], [1], [0, 0, 1, 1], [], []>} : vector<16x16xf32>, vector<16x16xf32>, vector<16x16xf32> -> vector<16x16xf32>
    %c688 = arith.constant 688 : index
    %c0_85 = arith.constant 0 : index
    %207 = vector.load %arg2[%c688, %c0_85] : memref<1072x64xf32, #tpu.memory_space<vmem>>, vector<16x32xf32>
    %cst_86 = arith.constant dense<0.000000e+00> : vector<16x32xf32>
    %208 = tpu.matmul %206, %207, %cst_86 {dimension_numbers = #tpu.dot_dimension_numbers<[1], [0], [0], [1], [0, 0, 1, 1], [], []>} : vector<16x16xf32>, vector<16x32xf32>, vector<16x32xf32> -> vector<16x32xf32>
    %209 = vector.broadcast %176 : vector<1x32xf32> to vector<16x32xf32>
    %210 = arith.addf %209, %208 : vector<16x32xf32>
    %c704 = arith.constant 704 : index
    %c0_87 = arith.constant 0 : index
    %211 = vector.load %arg2[%c704, %c0_87] : memref<1072x64xf32, #tpu.memory_space<vmem>>, vector<32x16xf32>
    %cst_88 = arith.constant dense<0.000000e+00> : vector<16x16xf32>
    %212 = tpu.matmul %175, %211, %cst_88 {dimension_numbers = #tpu.dot_dimension_numbers<[1], [0], [0], [1], [0, 0, 1, 1], [], []>} : vector<16x32xf32>, vector<32x16xf32>, vector<16x16xf32> -> vector<16x16xf32>
    %c736 = arith.constant 736 : index
    %c0_89 = arith.constant 0 : index
    %213 = vector.load %arg2[%c736, %c0_89] : memref<1072x64xf32, #tpu.memory_space<vmem>>, vector<1x16xf32>
    %214 = vector.broadcast %213 : vector<1x16xf32> to vector<16x16xf32>
    %215 = arith.addf %212, %214 : vector<16x16xf32>
    %c744 = arith.constant 744 : index
    %c0_90 = arith.constant 0 : index
    %216 = vector.load %arg2[%c744, %c0_90] : memref<1072x64xf32, #tpu.memory_space<vmem>>, vector<32x16xf32>
    %cst_91 = arith.constant dense<0.000000e+00> : vector<16x16xf32>
    %217 = tpu.matmul %175, %216, %cst_91 {dimension_numbers = #tpu.dot_dimension_numbers<[1], [0], [0], [1], [0, 0, 1, 1], [], []>} : vector<16x32xf32>, vector<32x16xf32>, vector<16x16xf32> -> vector<16x16xf32>
    %c776 = arith.constant 776 : index
    %c0_92 = arith.constant 0 : index
    %218 = vector.load %arg2[%c776, %c0_92] : memref<1072x64xf32, #tpu.memory_space<vmem>>, vector<1x16xf32>
    %219 = vector.broadcast %218 : vector<1x16xf32> to vector<16x16xf32>
    %220 = arith.addf %217, %219 : vector<16x16xf32>
    %c784 = arith.constant 784 : index
    %c0_93 = arith.constant 0 : index
    %221 = vector.load %arg2[%c784, %c0_93] : memref<1072x64xf32, #tpu.memory_space<vmem>>, vector<32x16xf32>
    %cst_94 = arith.constant dense<0.000000e+00> : vector<16x16xf32>
    %222 = tpu.matmul %175, %221, %cst_94 {dimension_numbers = #tpu.dot_dimension_numbers<[1], [0], [0], [1], [0, 0, 1, 1], [], []>} : vector<16x32xf32>, vector<32x16xf32>, vector<16x16xf32> -> vector<16x16xf32>
    %c816 = arith.constant 816 : index
    %c0_95 = arith.constant 0 : index
    %223 = vector.load %arg2[%c816, %c0_95] : memref<1072x64xf32, #tpu.memory_space<vmem>>, vector<1x16xf32>
    %224 = vector.broadcast %223 : vector<1x16xf32> to vector<16x16xf32>
    %225 = arith.addf %222, %224 : vector<16x16xf32>
    %cst_96 = arith.constant dense<0.000000e+00> : vector<16x16xf32>
    %226 = tpu.matmul %215, %220, %cst_96 {dimension_numbers = #tpu.dot_dimension_numbers<[1], [1], [0], [0], [0, 0, 1, 0], [], []>} : vector<16x16xf32>, vector<16x16xf32>, vector<16x16xf32> -> vector<16x16xf32>
    %cst_97 = arith.constant 2.500000e-01 : f32
    %227 = vector.broadcast %cst_97 : f32 to vector<16x16xf32>
    %228 = arith.mulf %226, %227 : vector<16x16xf32>
    %229 = arith.addf %228, %0 : vector<16x16xf32>
    %cst_98 = arith.constant dense<0xFF800000> : vector<16xf32>
    %230 = vector.multi_reduction <maximumf>, %229, %cst_98 [1] : vector<16x16xf32> to vector<16xf32>
    %231 = vector.shape_cast %230 : vector<16xf32> to vector<16x1xf32>
    %232 = vector.broadcast %231 : vector<16x1xf32> to vector<16x16xf32>
    %233 = arith.subf %229, %232 : vector<16x16xf32>
    %234 = math.exp %233 : vector<16x16xf32>
    %cst_99 = arith.constant dense<0.000000e+00> : vector<16xf32>
    %235 = vector.multi_reduction <add>, %234, %cst_99 [1] : vector<16x16xf32> to vector<16xf32>
    %236 = vector.shape_cast %235 : vector<16xf32> to vector<16x1xf32>
    %237 = tpu.reciprocal %236 {approx = true} : vector<16x1xf32> -> vector<16x1xf32>
    %238 = vector.broadcast %237 : vector<16x1xf32> to vector<16x16xf32>
    %239 = arith.mulf %234, %238 : vector<16x16xf32>
    %cst_100 = arith.constant dense<0.000000e+00> : vector<16x16xf32>
    %240 = tpu.matmul %239, %225, %cst_100 {dimension_numbers = #tpu.dot_dimension_numbers<[1], [0], [0], [1], [0, 0, 1, 1], [], []>} : vector<16x16xf32>, vector<16x16xf32>, vector<16x16xf32> -> vector<16x16xf32>
    %c824 = arith.constant 824 : index
    %c0_101 = arith.constant 0 : index
    %241 = vector.load %arg2[%c824, %c0_101] : memref<1072x64xf32, #tpu.memory_space<vmem>>, vector<16x32xf32>
    %cst_102 = arith.constant dense<0.000000e+00> : vector<16x32xf32>
    %242 = tpu.matmul %240, %241, %cst_102 {dimension_numbers = #tpu.dot_dimension_numbers<[1], [0], [0], [1], [0, 0, 1, 1], [], []>} : vector<16x16xf32>, vector<16x32xf32>, vector<16x32xf32> -> vector<16x32xf32>
    %243 = arith.addf %210, %242 : vector<16x32xf32>
    %244 = arith.addf %175, %243 : vector<16x32xf32>
    %c848 = arith.constant 848 : index
    %c0_103 = arith.constant 0 : index
    %245 = vector.load %arg2[%c848, %c0_103] : memref<1072x64xf32, #tpu.memory_space<vmem>>, vector<1x32xf32>
    %c856 = arith.constant 856 : index
    %c0_104 = arith.constant 0 : index
    %246 = vector.load %arg2[%c856, %c0_104] : memref<1072x64xf32, #tpu.memory_space<vmem>>, vector<1x32xf32>
    %cst_105 = arith.constant dense<0.000000e+00> : vector<16xf32>
    %247 = vector.multi_reduction <add>, %244, %cst_105 [1] : vector<16x32xf32> to vector<16xf32>
    %248 = vector.shape_cast %247 : vector<16xf32> to vector<16x1xf32>
    %cst_106 = arith.constant 3.200000e+01 : f32
    %249 = vector.broadcast %cst_106 : f32 to vector<16x1xf32>
    %250 = arith.divf %248, %249 : vector<16x1xf32>
    %251 = vector.broadcast %250 : vector<16x1xf32> to vector<16x32xf32>
    %252 = arith.subf %244, %251 : vector<16x32xf32>
    %253 = arith.mulf %252, %252 : vector<16x32xf32>
    %cst_107 = arith.constant dense<0.000000e+00> : vector<16xf32>
    %254 = vector.multi_reduction <add>, %253, %cst_107 [1] : vector<16x32xf32> to vector<16xf32>
    %255 = vector.shape_cast %254 : vector<16xf32> to vector<16x1xf32>
    %cst_108 = arith.constant 3.200000e+01 : f32
    %256 = vector.broadcast %cst_108 : f32 to vector<16x1xf32>
    %257 = arith.divf %255, %256 : vector<16x1xf32>
    %258 = vector.broadcast %250 : vector<16x1xf32> to vector<16x32xf32>
    %259 = arith.subf %244, %258 : vector<16x32xf32>
    %cst_109 = arith.constant 9.99999996E-13 : f32
    %260 = vector.broadcast %cst_109 : f32 to vector<16x1xf32>
    %261 = arith.addf %257, %260 : vector<16x1xf32>
    %262 = math.rsqrt %261 : vector<16x1xf32>
    %263 = vector.broadcast %262 : vector<16x1xf32> to vector<16x32xf32>
    %264 = arith.mulf %259, %263 : vector<16x32xf32>
    %265 = vector.broadcast %245 : vector<1x32xf32> to vector<16x32xf32>
    %266 = arith.mulf %264, %265 : vector<16x32xf32>
    %267 = vector.broadcast %246 : vector<1x32xf32> to vector<16x32xf32>
    %268 = arith.addf %266, %267 : vector<16x32xf32>
    %c864 = arith.constant 864 : index
    %c0_110 = arith.constant 0 : index
    %269 = vector.load %arg2[%c864, %c0_110] : memref<1072x64xf32, #tpu.memory_space<vmem>>, vector<32x64xf32>
    %cst_111 = arith.constant dense<0.000000e+00> : vector<16x64xf32>
    %270 = tpu.matmul %268, %269, %cst_111 {dimension_numbers = #tpu.dot_dimension_numbers<[1], [0], [0], [1], [0, 0, 1, 1], [], []>} : vector<16x32xf32>, vector<32x64xf32>, vector<16x64xf32> -> vector<16x64xf32>
    %c896 = arith.constant 896 : index
    %c0_112 = arith.constant 0 : index
    %271 = vector.load %arg2[%c896, %c0_112] : memref<1072x64xf32, #tpu.memory_space<vmem>>, vector<1x64xf32>
    %272 = vector.broadcast %271 : vector<1x64xf32> to vector<16x64xf32>
    %273 = arith.addf %270, %272 : vector<16x64xf32>
    %cst_113 = arith.constant 5.000000e-01 : f32
    %274 = vector.broadcast %cst_113 : f32 to vector<16x64xf32>
    %275 = arith.mulf %274, %273 : vector<16x64xf32>
    %cst_114 = arith.constant 4.471500e-02 : f32
    %276 = vector.broadcast %cst_114 : f32 to vector<16x64xf32>
    %277 = arith.mulf %276, %273 : vector<16x64xf32>
    %278 = arith.mulf %277, %273 : vector<16x64xf32>
    %279 = arith.mulf %278, %273 : vector<16x64xf32>
    %280 = arith.addf %273, %279 : vector<16x64xf32>
    %cst_115 = arith.constant 0.797884583 : f32
    %281 = vector.broadcast %cst_115 : f32 to vector<16x64xf32>
    %282 = arith.mulf %281, %280 : vector<16x64xf32>
    %283 = math.tanh %282 : vector<16x64xf32>
    %cst_116 = arith.constant 1.000000e+00 : f32
    %284 = vector.broadcast %cst_116 : f32 to vector<16x64xf32>
    %285 = arith.addf %284, %283 : vector<16x64xf32>
    %286 = arith.mulf %275, %285 : vector<16x64xf32>
    %c904 = arith.constant 904 : index
    %c0_117 = arith.constant 0 : index
    %287 = vector.load %arg2[%c904, %c0_117] : memref<1072x64xf32, #tpu.memory_space<vmem>>, vector<64x32xf32>
    %cst_118 = arith.constant dense<0.000000e+00> : vector<16x32xf32>
    %288 = tpu.matmul %286, %287, %cst_118 {dimension_numbers = #tpu.dot_dimension_numbers<[1], [0], [0], [1], [0, 0, 1, 1], [], []>} : vector<16x64xf32>, vector<64x32xf32>, vector<16x32xf32> -> vector<16x32xf32>
    %c968 = arith.constant 968 : index
    %c0_119 = arith.constant 0 : index
    %289 = vector.load %arg2[%c968, %c0_119] : memref<1072x64xf32, #tpu.memory_space<vmem>>, vector<1x32xf32>
    %290 = vector.broadcast %289 : vector<1x32xf32> to vector<16x32xf32>
    %291 = arith.addf %288, %290 : vector<16x32xf32>
    %292 = arith.addf %268, %291 : vector<16x32xf32>
    %c976 = arith.constant 976 : index
    %c0_120 = arith.constant 0 : index
    %293 = vector.load %arg2[%c976, %c0_120] : memref<1072x64xf32, #tpu.memory_space<vmem>>, vector<1x32xf32>
    %c984 = arith.constant 984 : index
    %c0_121 = arith.constant 0 : index
    %294 = vector.load %arg2[%c984, %c0_121] : memref<1072x64xf32, #tpu.memory_space<vmem>>, vector<1x32xf32>
    %cst_122 = arith.constant dense<0.000000e+00> : vector<16xf32>
    %295 = vector.multi_reduction <add>, %292, %cst_122 [1] : vector<16x32xf32> to vector<16xf32>
    %296 = vector.shape_cast %295 : vector<16xf32> to vector<16x1xf32>
    %cst_123 = arith.constant 3.200000e+01 : f32
    %297 = vector.broadcast %cst_123 : f32 to vector<16x1xf32>
    %298 = arith.divf %296, %297 : vector<16x1xf32>
    %299 = vector.broadcast %298 : vector<16x1xf32> to vector<16x32xf32>
    %300 = arith.subf %292, %299 : vector<16x32xf32>
    %301 = arith.mulf %300, %300 : vector<16x32xf32>
    %cst_124 = arith.constant dense<0.000000e+00> : vector<16xf32>
    %302 = vector.multi_reduction <add>, %301, %cst_124 [1] : vector<16x32xf32> to vector<16xf32>
    %303 = vector.shape_cast %302 : vector<16xf32> to vector<16x1xf32>
    %cst_125 = arith.constant 3.200000e+01 : f32
    %304 = vector.broadcast %cst_125 : f32 to vector<16x1xf32>
    %305 = arith.divf %303, %304 : vector<16x1xf32>
    %306 = vector.broadcast %298 : vector<16x1xf32> to vector<16x32xf32>
    %307 = arith.subf %292, %306 : vector<16x32xf32>
    %cst_126 = arith.constant 9.99999996E-13 : f32
    %308 = vector.broadcast %cst_126 : f32 to vector<16x1xf32>
    %309 = arith.addf %305, %308 : vector<16x1xf32>
    %310 = math.rsqrt %309 : vector<16x1xf32>
    %311 = vector.broadcast %310 : vector<16x1xf32> to vector<16x32xf32>
    %312 = arith.mulf %307, %311 : vector<16x32xf32>
    %313 = vector.broadcast %293 : vector<1x32xf32> to vector<16x32xf32>
    %314 = arith.mulf %312, %313 : vector<16x32xf32>
    %315 = vector.broadcast %294 : vector<1x32xf32> to vector<16x32xf32>
    %316 = arith.addf %314, %315 : vector<16x32xf32>
    %c136 = arith.constant 136 : index
    %c0_127 = arith.constant 0 : index
    %317 = vector.load %arg2[%c136, %c0_127] : memref<1072x64xf32, #tpu.memory_space<vmem>>, vector<2x16xf32>
    %cst_128 = arith.constant dense<0.000000e+00> : vector<2x32xf32>
    %318 = tpu.matmul %317, %316, %cst_128 {dimension_numbers = #tpu.dot_dimension_numbers<[1], [0], [0], [1], [0, 0, 1, 1], [], []>} : vector<2x16xf32>, vector<16x32xf32>, vector<2x32xf32> -> vector<2x32xf32>
    %c992 = arith.constant 992 : index
    %c0_129 = arith.constant 0 : index
    %319 = vector.load %arg2[%c992, %c0_129] : memref<1072x64xf32, #tpu.memory_space<vmem>>, vector<32x32xf32>
    %cst_130 = arith.constant dense<0.000000e+00> : vector<2x32xf32>
    %320 = tpu.matmul %318, %319, %cst_130 {dimension_numbers = #tpu.dot_dimension_numbers<[1], [0], [0], [1], [0, 0, 1, 1], [], []>} : vector<2x32xf32>, vector<32x32xf32>, vector<2x32xf32> -> vector<2x32xf32>
    %c1024 = arith.constant 1024 : index
    %c0_131 = arith.constant 0 : index
    %321 = vector.load %arg2[%c1024, %c0_131] : memref<1072x64xf32, #tpu.memory_space<vmem>>, vector<1x32xf32>
    %322 = vector.broadcast %321 : vector<1x32xf32> to vector<2x32xf32>
    %323 = arith.addf %320, %322 : vector<2x32xf32>
    %324 = math.tanh %323 : vector<2x32xf32>
    %c1032 = arith.constant 1032 : index
    %c0_132 = arith.constant 0 : index
    %325 = vector.load %arg2[%c1032, %c0_132] : memref<1072x64xf32, #tpu.memory_space<vmem>>, vector<32x3xf32>
    %cst_133 = arith.constant dense<0.000000e+00> : vector<2x3xf32>
    %326 = tpu.matmul %324, %325, %cst_133 {dimension_numbers = #tpu.dot_dimension_numbers<[1], [0], [0], [1], [0, 0, 1, 1], [], []>} : vector<2x32xf32>, vector<32x3xf32>, vector<2x3xf32> -> vector<2x3xf32>
    %c1064 = arith.constant 1064 : index
    %c0_134 = arith.constant 0 : index
    %327 = vector.load %arg2[%c1064, %c0_134] : memref<1072x64xf32, #tpu.memory_space<vmem>>, vector<1x3xf32>
    %328 = vector.broadcast %327 : vector<1x3xf32> to vector<2x3xf32>
    %329 = arith.addf %326, %328 : vector<2x3xf32>
    %c0_135 = arith.constant 0 : index
    %c0_136 = arith.constant 0 : index
    %330 = vector.load %arg3[%c0_135, %c0_136] : memref<2x3xf32, #tpu.memory_space<vmem>>, vector<2x3xf32>
    tpu.vector_store %arg3[%c0_135, %c0_136], %329 {strides = array<i32>} : memref<2x3xf32, #tpu.memory_space<vmem>>, vector<2x3xf32>,
    return
  }
}

</mosaic_0001>

<llo_original>
// kernel: forward.1
$region0: #{forward.1}
  #allocation0 [shape = 'u32[]', space=smem, size = 0x4, offset = 0x4, fixed_abs, tag = 'smem constant byte address 0x4 - core index']
  #allocation1 [shape = 'u32[72,128]{1,0:T(1,128)}', space=vmem, size = 0x9000, scoped, tag = 'internal scratch']
  %s0 = inlined_call_operand.vmem [shape: s32[16,1], index: 0, kind: input, shape index: {}]
  %s1 = inlined_call_operand.vmem [shape: f32[16,16], index: 1, kind: input, shape index: {}]
  %s2 = inlined_call_operand.vmem [shape: f32[1072,64], index: 2, kind: input, shape index: {}]
  %s3 = inlined_call_operand.hbm [shape: f32[2,3], index: 3, kind: output, shape index: {}]
  %s4 = sld [smem:[#allocation0]]
  $region22: #{forward.1} parent=0
    _
  %s6 = ssub.s32 1, %s4
  %s7 = scalar_select 0, %s6, %s4
  $region1: #{forward.1} parent=0
    #allocation2 [shape = 'u8[1024]{0}', space=vmem, size = 0x400, scoped, tag = 'output window, operand 0, single buffered']
    #allocation3 [shape = 's32[1]{0}', space=sflag, size = 0x4, scoped, tag = 'scoped memory for forward.1']
    %8 = vsyncpa [#allocation3], 0
    // Predicated region
    $region2: #{forward.1} parent=1 // pred_check
      _
    $region3: #{forward.1} parent=1 // pred_check_branch
      %10 = sbr.rel (0) target = $region5
    $region4: #{forward.1} parent=1 // pred_region
      _
    $region5: #{forward.1} parent=1 // pred_fallthru
      _
    // Predicated region
    $region6: #{forward.1} parent=1 // pred_check
      _
    $region7: #{forward.1} parent=1 // pred_check_branch
      %12 = sbr.rel (0) target = $region9
    $region8: #{forward.1} parent=1 // pred_region
      _
    $region9: #{forward.1} parent=1 // pred_fallthru
      _
    // Predicated region
    $region10: #{forward.1} parent=1 // pred_check
      _
    $region11: #{forward.1} parent=1 // pred_check_branch
      %14 = sbr.rel (0) target = $region13
    $region12: #{forward.1} parent=1 // pred_region
      _
    $region13: #{forward.1} parent=1 // pred_fallthru
      _
    %v15 = vld [vmem:[%s1] sm:$0xff]
    %v16 = vld [vmem:[%s1 + $0x8] sm:$0xff]
    %v17 = vld [vmem:[%s0] sm:$0xff]
    %v18 = vld [vmem:[%s0 + $0x8] sm:$0xff]
    %v19 = vlaneseq
    %v20 = vand.u32 %v19, 127
    %21 = vset.pattern.permute.xlu0 0
    %22 = vperm.xlu0 %21, %v17
    %v23 = vpop.permute.xlu0 %22
    %24 = vset.pattern.permute.xlu0 0
    %25 = vperm.xlu0 %24, %v18
    %v26 = vpop.permute.xlu0 %25
    %vm27 = vcmp.eq.s32.totalorder %v20, %v23
    %vm28 = vcmp.eq.s32.totalorder %v20, %v26
    %v29 = vsel %vm27, 1, 0
    %v30 = vsel %vm28, 1, 0
    %v31 = vcvt.s32.f32 %v29
    %v32 = vcvt.s32.f32 %v30
    %v33 = vld [vmem:[%s2] sm:$0xff]
    %v34 = vld [vmem:[%s2 + $0x8] sm:$0xff]
    %v35 = vld [vmem:[%s2 + $0x10] sm:$0xff]
    %v36 = vld [vmem:[%s2 + $0x18] sm:$0xff]
    %v37 = vld [vmem:[%s2 + $0x20] sm:$0xff]
    %v38 = vld [vmem:[%s2 + $0x28] sm:$0xff]
    %v39 = vld [vmem:[%s2 + $0x30] sm:$0xff]
    %v40 = vld [vmem:[%s2 + $0x38] sm:$0xff]
    %v41 = vld [vmem:[%s2 + $0x40] sm:$0xff]
    %v42 = vld [vmem:[%s2 + $0x48] sm:$0xff]
    %v43 = vld [vmem:[%s2 + $0x50] sm:$0xff]
    %v44 = vld [vmem:[%s2 + $0x58] sm:$0xff]
    %v45 = vld [vmem:[%s2 + $0x60] sm:$0xff]
    %v46 = vld [vmem:[%s2 + $0x68] sm:$0xff]
    %v47 = vld [vmem:[%s2 + $0x70] sm:$0xff]
    %vm48 = vcmask 850944
    %v50 = vsel %vm48, %v31, 0
    %v53 = vsel %vm48, %v32, 0
    %55 = vmatpush.msra.mxu0 0.0
    %56 = vmatpush.msra.mxu0 0.0
    %57 = vmatpush.msra.mxu0 0.0
    %58 = vmatpush.msra.mxu0 %v45
    %59 = vmatpush.msra.mxu0 %v44
    %60 = vmatpush.msra.mxu0 %v43
    %61 = vmatpush.msra.mxu0 %v42
    %62 = vmatpush.msra.mxu0 %v41
    %63 = vmatpush.msra.mxu0 %v40
    %64 = vmatpush.msra.mxu0 %v39
    %65 = vmatpush.msra.mxu0 %v38
    %66 = vmatpush.msra.mxu0 %v37
    %67 = vmatpush.msra.mxu0 %v36
    %68 = vmatpush.msra.mxu0 %v35
    %69 = vmatpush.msra.mxu0 %v34
    %70 = vmatpush.msra.mxu0 %v33
    %71 = vmatmul.f32.gmra.mxu0 %v50
    %v72 = vpop.f32.mrf.mxu0
    %v73 = vadd.f32 %v46, %v72
    %74 = vmatmul.f32.gmra.mxu0 %v53
    %v75 = vpop.f32.mrf.mxu0
    %v76 = vadd.f32 %v47, %v75
    %77 = vdwg.mxu0
    %v78 = vld [vmem:[%s2 + $0x78] sm:$0x1]
    %v79 = vld [vmem:[%s2 + $0x80] sm:$0x1]
    %vm80 = vcmask 261120
    %v81 = vsel %vm80, %v73, 0.0
    %82 = vadd.xlane.f32.xlu0 %v81
    %v83 = vpop.xlane.xlu0 %82
    %v84 = vsel %vm80, %v76, 0.0
    %85 = vadd.xlane.f32.xlu0 %v84
    %v86 = vpop.xlane.xlu0 %85
    %v87 = vrcp.pop 32.0
    %v88 = vmul.f32 32.0, %v87
    %v89 = vsub.f32 1.0, %v88
    %v90 = vmul.f32 %v87, %v89
    %v91 = vadd.f32 %v87, %v90
    %vm92 = vweird.f32 %v87
    %v93 = vsel %vm92, %v87, %v91
    %v94 = vmul.f32 %v83, %v93
    %v95 = vmul.f32 %v86, %v93
    %v96 = vsub.f32 %v73, %v94
    %v97 = vsub.f32 %v76, %v95
    %v98 = vmul.f32 %v96, %v96
    %v99 = vmul.f32 %v97, %v97
    %v100 = vsel %vm80, %v98, 0.0
    %101 = vadd.xlane.f32.xlu0 %v100
    %v102 = vpop.xlane.xlu0 %101
    %v103 = vsel %vm80, %v99, 0.0
    %104 = vadd.xlane.f32.xlu0 %v103
    %v105 = vpop.xlane.xlu0 %104
    %v106 = vmul.f32 %v102, %v93
    %v107 = vmul.f32 %v105, %v93
    %v108 = vadd.f32 %v106, 1e-12
    %v109 = vadd.f32 %v107, 1e-12
    %v110 = vrsqrt.pop %v108
    %v111 = vmul.f32 %v110, %v108
    %v112 = vmul.f32 %v111, %v110
    %v113 = vmul.f32 0.5, %v112
    %v114 = vsub.f32 1.5, %v113
    %v115 = vmul.f32 %v110, %v114
    %vm116 = vweird.f32 %v108
    %vm117 = vweird.f32 %v110
    %vm118 = vmor %vm116, %vm117
    %v119 = vsel %vm118, %v110, %v115
    %v120 = vrsqrt.pop %v109
    %v121 = vmul.f32 %v120, %v109
    %v122 = vmul.f32 %v121, %v120
    %v123 = vmul.f32 0.5, %v122
    %v124 = vsub.f32 1.5, %v123
    %v125 = vmul.f32 %v120, %v124
    %vm126 = vweird.f32 %v109
    %vm127 = vweird.f32 %v120
    %vm128 = vmor %vm126, %vm127
    %v129 = vsel %vm128, %v120, %v125
    %v130 = vmul.f32 %v96, %v119
    %v131 = vmul.f32 %v97, %v129
    %v132 = vperm.slane %v78, 0
    %v133 = vmul.f32 %v130, %v132
    %v134 = vmul.f32 %v131, %v132
    %v135 = vperm.slane %v79, 0
    %v136 = vadd.f32 %v133, %v135
    %v137 = vadd.f32 %v134, %v135
    %v138 = vld [vmem:[%s2 + $0x1a0] sm:$0x1]
    %v139 = vld [vmem:[%s2 + $0x90] sm:$0xff]
    %v140 = vld [vmem:[%s2 + $0x98] sm:$0xff]
    %v141 = vld [vmem:[%s2 + $0xa0] sm:$0xff]
    %v142 = vld [vmem:[%s2 + $0xa8] sm:$0xff]
    %v143 = vld [vmem:[%s2 + $0xb0] sm:$0x1]
    %v144 = vperm.slane %v143, 0
    %v146 = vsel %vm80, %v136, 0
    %v149 = vsel %vm80, %v137, 0
    %151 = vmatpush.msra.mxu0 0.0
    %152 = vmatpush.msra.mxu0 0.0
    %153 = vmatpush.msra.mxu0 0.0
    %154 = vmatpush.msra.mxu0 0.0
    %155 = vmatpush.msra.mxu0 0.0
    %156 = vmatpush.msra.mxu0 0.0
    %157 = vmatpush.msra.mxu0 0.0
    %158 = vmatpush.msra.mxu0 0.0
    %159 = vmatpush.msra.mxu0 0.0
    %160 = vmatpush.msra.mxu0 0.0
    %161 = vmatpush.msra.mxu0 0.0
    %162 = vmatpush.msra.mxu0 0.0
    %163 = vmatpush.msra.mxu0 %v142
    %164 = vmatpush.msra.mxu0 %v141
    %165 = vmatpush.msra.mxu0 %v140
    %166 = vmatpush.msra.mxu0 %v139
    %167 = vmatmul.f32.gmra.mxu0 %v146
    %v168 = vpop.f32.mrf.mxu0
    %v169 = vadd.f32 %v144, %v168
    %170 = vmatmul.f32.gmra.mxu0 %v149
    %v171 = vpop.f32.mrf.mxu0
    %v172 = vadd.f32 %v144, %v171
    %173 = vdwg.mxu0
    %v174 = vld [vmem:[%s2 + $0xb8] sm:$0xff]
    %v175 = vld [vmem:[%s2 + $0xc0] sm:$0xff]
    %v176 = vld [vmem:[%s2 + $0xc8] sm:$0xff]
    %v177 = vld [vmem:[%s2 + $0xd0] sm:$0xff]
    %v178 = vld [vmem:[%s2 + $0xd8] sm:$0x1]
    %v179 = vperm.slane %v178, 0
    %180 = vmatpush.msra.mxu0 0.0
    %181 = vmatpush.msra.mxu0 0.0
    %182 = vmatpush.msra.mxu0 0.0
    %183 = vmatpush.msra.mxu0 0.0
    %184 = vmatpush.msra.mxu0 0.0
    %185 = vmatpush.msra.mxu0 0.0
    %186 = vmatpush.msra.mxu0 0.0
    %187 = vmatpush.msra.mxu0 0.0
    %188 = vmatpush.msra.mxu0 0.0
    %189 = vmatpush.msra.mxu0 0.0
    %190 = vmatpush.msra.mxu0 0.0
    %191 = vmatpush.msra.mxu0 0.0
    %192 = vmatpush.msra.mxu0 %v177
    %193 = vmatpush.msra.mxu0 %v176
    %194 = vmatpush.msra.mxu0 %v175
    %195 = vmatpush.msra.mxu0 %v174
    %196 = vmatmul.f32.gmra.mxu0 %v146
    %v197 = vpop.f32.mrf.mxu0
    %v198 = vadd.f32 %v179, %v197
    %199 = vmatmul.f32.gmra.mxu0 %v149
    %v200 = vpop.f32.mrf.mxu0
    %v201 = vadd.f32 %v179, %v200
    %202 = vdwg.mxu0
    %v203 = vld [vmem:[%s2 + $0xe0] sm:$0xff]
    %v204 = vld [vmem:[%s2 + $0xe8] sm:$0xff]
    %v205 = vld [vmem:[%s2 + $0xf0] sm:$0xff]
    %v206 = vld [vmem:[%s2 + $0xf8] sm:$0xff]
    %v207 = vld [vmem:[%s2 + $0x100] sm:$0x1]
    %v208 = vperm.slane %v207, 0
    %209 = vmatpush.msra.mxu0 0.0
    %210 = vmatpush.msra.mxu0 0.0
    %211 = vmatpush.msra.mxu0 0.0
    %212 = vmatpush.msra.mxu0 0.0
    %213 = vmatpush.msra.mxu0 0.0
    %214 = vmatpush.msra.mxu0 0.0
    %215 = vmatpush.msra.mxu0 0.0
    %216 = vmatpush.msra.mxu0 0.0
    %217 = vmatpush.msra.mxu0 0.0
    %218 = vmatpush.msra.mxu0 0.0
    %219 = vmatpush.msra.mxu0 0.0
    %220 = vmatpush.msra.mxu0 0.0
    %221 = vmatpush.msra.mxu0 %v206
    %222 = vmatpush.msra.mxu0 %v205
    %223 = vmatpush.msra.mxu0 %v204
    %224 = vmatpush.msra.mxu0 %v203
    %225 = vmatmul.f32.gmra.mxu0 %v146
    %v226 = vpop.f32.mrf.mxu0
    %v227 = vadd.f32 %v208, %v226
    %228 = vmatmul.f32.gmra.mxu0 %v149
    %v229 = vpop.f32.mrf.mxu0
    %v230 = vadd.f32 %v208, %v229
    %231 = vdwg.mxu0
    %vm232 = vcmask 130048
    %v234 = vsel %vm232, %v169, 0
    %v237 = vsel %vm232, %v172, 0
    %v240 = vsel %vm232, %v198, 0
    %v243 = vsel %vm232, %v201, 0
    %245 = vmatpush.xpose.msra.mxu0 0.0
    %246 = vmatpush.xpose.msra.mxu0 0.0
    %247 = vmatpush.xpose.msra.mxu0 0.0
    %248 = vmatpush.xpose.msra.mxu0 0.0
    %249 = vmatpush.xpose.msra.mxu0 0.0
    %250 = vmatpush.xpose.msra.mxu0 0.0
    %251 = vmatpush.xpose.msra.mxu0 0.0
    %252 = vmatpush.xpose.msra.mxu0 0.0
    %253 = vmatpush.xpose.msra.mxu0 0.0
    %254 = vmatpush.xpose.msra.mxu0 0.0
    %255 = vmatpush.xpose.msra.mxu0 0.0
    %256 = vmatpush.xpose.msra.mxu0 0.0
    %257 = vmatpush.xpose.msra.mxu0 0.0
    %258 = vmatpush.xpose.msra.mxu0 0.0
    %259 = vmatpush.xpose.msra.mxu0 %v243
    %260 = vmatpush.xpose.msra.mxu0 %v240
    %261 = vmatmul.f32.gmra.mxu0 %v234
    %v262 = vpop.f32.mrf.mxu0
    %v263 = vadd.f32 0.0, %v262
    %264 = vmatmul.f32.gmra.mxu0 %v237
    %v265 = vpop.f32.mrf.mxu0
    %v266 = vadd.f32 0.0, %v265
    %267 = vdwg.mxu0
    %v268 = vmul.f32 %v263, 0.25
    %v269 = vmul.f32 %v266, 0.25
    %v270 = vadd.f32 %v268, %v15
    %v271 = vadd.f32 %v269, %v16
    %v272 = vsel %vm232, %v270, -inf
    %273 = vmax.xlane.f32.xlu0 %v272
    %v274 = vpop.xlane.xlu0 %273
    %v275 = vsel %vm232, %v271, -inf
    %276 = vmax.xlane.f32.xlu0 %v275
    %v277 = vpop.xlane.xlu0 %276
    %v278 = vsub.f32 %v270, %v274
    %v279 = vsub.f32 %v271, %v277
    %v280 = vmul.f32 %v278, 1.442695
    %v281 = vpow.pop %v280
    %v282 = vmul.f32 %v279, 1.442695
    %v283 = vpow.pop %v282
    %v284 = vsel %vm232, %v281, 0.0
    %285 = vadd.xlane.f32.xlu0 %v284
    %v286 = vpop.xlane.xlu0 %285
    %v287 = vsel %vm232, %v283, 0.0
    %288 = vadd.xlane.f32.xlu0 %v287
    %v289 = vpop.xlane.xlu0 %288
    %v290 = vrcp.pop %v286
    %v291 = vrcp.pop %v289
    %v292 = vmul.f32 %v281, %v290
    %v293 = vmul.f32 %v283, %v291
    %v295 = vsel %vm232, %v292, 0
    %v298 = vsel %vm232, %v293, 0
    %300 = vmatpush.msra.mxu0 0.0
    %301 = vmatpush.msra.mxu0 0.0
    %302 = vmatpush.msra.mxu0 0.0
    %303 = vmatpush.msra.mxu0 0.0
    %304 = vmatpush.msra.mxu0 0.0
    %305 = vmatpush.msra.mxu0 0.0
    %306 = vmatpush.msra.mxu0 0.0
    %307 = vmatpush.msra.mxu0 0.0
    %308 = vmatpush.msra.mxu0 0.0
    %309 = vmatpush.msra.mxu0 0.0
    %310 = vmatpush.msra.mxu0 0.0
    %311 = vmatpush.msra.mxu0 0.0
    %312 = vmatpush.msra.mxu0 0.0
    %313 = vmatpush.msra.mxu0 0.0
    %314 = vmatpush.msra.mxu0 %v230
    %315 = vmatpush.msra.mxu0 %v227
    %316 = vmatmul.f32.gmra.mxu0 %v295
    %v317 = vpop.f32.mrf.mxu0
    %v318 = vadd.f32 0.0, %v317
    %319 = vmatmul.f32.gmra.mxu0 %v298
    %v320 = vpop.f32.mrf.mxu0
    %v321 = vadd.f32 0.0, %v320
    %322 = vdwg.mxu0
    %v323 = vld [vmem:[%s2 + $0x108] sm:$0xff]
    %v324 = vld [vmem:[%s2 + $0x110] sm:$0xff]
    %v326 = vsel %vm232, %v318, 0
    %v329 = vsel %vm232, %v321, 0
    %331 = vmatpush.msra.mxu0 0.0
    %332 = vmatpush.msra.mxu0 0.0
    %333 = vmatpush.msra.mxu0 0.0
    %334 = vmatpush.msra.mxu0 0.0
    %335 = vmatpush.msra.mxu0 0.0
    %336 = vmatpush.msra.mxu0 0.0
    %337 = vmatpush.msra.mxu0 0.0
    %338 = vmatpush.msra.mxu0 0.0
    %339 = vmatpush.msra.mxu0 0.0
    %340 = vmatpush.msra.mxu0 0.0
    %341 = vmatpush.msra.mxu0 0.0
    %342 = vmatpush.msra.mxu0 0.0
    %343 = vmatpush.msra.mxu0 0.0
    %344 = vmatpush.msra.mxu0 0.0
    %345 = vmatpush.msra.mxu0 %v324
    %346 = vmatpush.msra.mxu0 %v323
    %347 = vmatmul.f32.gmra.mxu0 %v326
    %v348 = vpop.f32.mrf.mxu0
    %v349 = vadd.f32 0.0, %v348
    %350 = vmatmul.f32.gmra.mxu0 %v329
    %v351 = vpop.f32.mrf.mxu0
    %v352 = vadd.f32 0.0, %v351
    %353 = vdwg.mxu0
    %v354 = vperm.slane %v138, 0
    %v355 = vadd.f32 %v354, %v349
    %v356 = vadd.f32 %v354, %v352
    %v357 = vld [vmem:[%s2 + $0x118] sm:$0xff]
    %v358 = vld [vmem:[%s2 + $0x120] sm:$0xff]
    %v359 = vld [vmem:[%s2 + $0x128] sm:$0xff]
    %v360 = vld [vmem:[%s2 + $0x130] sm:$0xff]
    %v361 = vld [vmem:[%s2 + $0x138] sm:$0x1]
    %v362 = vperm.slane %v361, 0
    %363 = vmatpush.msra.mxu0 0.0
    %364 = vmatpush.msra.mxu0 0.0
    %365 = vmatpush.msra.mxu0 0.0
    %366 = vmatpush.msra.mxu0 0.0
    %367 = vmatpush.msra.mxu0 0.0
    %368 = vmatpush.msra.mxu0 0.0
    %369 = vmatpush.msra.mxu0 0.0
    %370 = vmatpush.msra.mxu0 0.0
    %371 = vmatpush.msra.mxu0 0.0
    %372 = vmatpush.msra.mxu0 0.0
    %373 = vmatpush.msra.mxu0 0.0
    %374 = vmatpush.msra.mxu0 0.0
    %375 = vmatpush.msra.mxu0 %v360
    %376 = vmatpush.msra.mxu0 %v359
    %377 = vmatpush.msra.mxu0 %v358
    %378 = vmatpush.msra.mxu0 %v357
    %379 = vmatmul.f32.gmra.mxu0 %v146
    %v380 = vpop.f32.mrf.mxu0
    %v381 = vadd.f32 %v362, %v380
    %382 = vmatmul.f32.gmra.mxu0 %v149
    %v383 = vpop.f32.mrf.mxu0
    %v384 = vadd.f32 %v362, %v383
    %385 = vdwg.mxu0
    %v386 = vld [vmem:[%s2 + $0x140] sm:$0xff]
    %v387 = vld [vmem:[%s2 + $0x148] sm:$0xff]
    %v388 = vld [vmem:[%s2 + $0x150] sm:$0xff]
    %v389 = vld [vmem:[%s2 + $0x158] sm:$0xff]
    %v390 = vld [vmem:[%s2 + $0x160] sm:$0x1]
    %v391 = vperm.slane %v390, 0
    %392 = vmatpush.msra.mxu0 0.0
    %393 = vmatpush.msra.mxu0 0.0
    %394 = vmatpush.msra.mxu0 0.0
    %395 = vmatpush.msra.mxu0 0.0
    %396 = vmatpush.msra.mxu0 0.0
    %397 = vmatpush.msra.mxu0 0.0
    %398 = vmatpush.msra.mxu0 0.0
    %399 = vmatpush.msra.mxu0 0.0
    %400 = vmatpush.msra.mxu0 0.0
    %401 = vmatpush.msra.mxu0 0.0
    %402 = vmatpush.msra.mxu0 0.0
    %403 = vmatpush.msra.mxu0 0.0
    %404 = vmatpush.msra.mxu0 %v389
    %405 = vmatpush.msra.mxu0 %v388
    %406 = vmatpush.msra.mxu0 %v387
    %407 = vmatpush.msra.mxu0 %v386
    %408 = vmatmul.f32.gmra.mxu0 %v146
    %v409 = vpop.f32.mrf.mxu0
    %v410 = vadd.f32 %v391, %v409
    %411 = vmatmul.f32.gmra.mxu0 %v149
    %v412 = vpop.f32.mrf.mxu0
    %v413 = vadd.f32 %v391, %v412
    %414 = vdwg.mxu0
    %v415 = vld [vmem:[%s2 + $0x168] sm:$0xff]
    %v416 = vld [vmem:[%s2 + $0x170] sm:$0xff]
    %v417 = vld [vmem:[%s2 + $0x178] sm:$0xff]
    %v418 = vld [vmem:[%s2 + $0x180] sm:$0xff]
    %v419 = vld [vmem:[%s2 + $0x188] sm:$0x1]
    %v420 = vperm.slane %v419, 0
    %421 = vmatpush.msra.mxu0 0.0
    %422 = vmatpush.msra.mxu0 0.0
    %423 = vmatpush.msra.mxu0 0.0
    %424 = vmatpush.msra.mxu0 0.0
    %425 = vmatpush.msra.mxu0 0.0
    %426 = vmatpush.msra.mxu0 0.0
    %427 = vmatpush.msra.mxu0 0.0
    %428 = vmatpush.msra.mxu0 0.0
    %429 = vmatpush.msra.mxu0 0.0
    %430 = vmatpush.msra.mxu0 0.0
    %431 = vmatpush.msra.mxu0 0.0
    %432 = vmatpush.msra.mxu0 0.0
    %433 = vmatpush.msra.mxu0 %v418
    %434 = vmatpush.msra.mxu0 %v417
    %435 = vmatpush.msra.mxu0 %v416
    %436 = vmatpush.msra.mxu0 %v415
    %437 = vmatmul.f32.gmra.mxu0 %v146
    %v438 = vpop.f32.mrf.mxu0
    %v439 = vadd.f32 %v420, %v438
    %440 = vmatmul.f32.gmra.mxu0 %v149
    %v441 = vpop.f32.mrf.mxu0
    %v442 = vadd.f32 %v420, %v441
    %443 = vdwg.mxu0
    %v445 = vsel %vm232, %v381, 0
    %v448 = vsel %vm232, %v384, 0
    %v451 = vsel %vm232, %v410, 0
    %v454 = vsel %vm232, %v413, 0
    %456 = vmatpush.xpose.msra.mxu0 0.0
    %457 = vmatpush.xpose.msra.mxu0 0.0
    %458 = vmatpush.xpose.msra.mxu0 0.0
    %459 = vmatpush.xpose.msra.mxu0 0.0
    %460 = vmatpush.xpose.msra.mxu0 0.0
    %461 = vmatpush.xpose.msra.mxu0 0.0
    %462 = vmatpush.xpose.msra.mxu0 0.0
    %463 = vmatpush.xpose.msra.mxu0 0.0
    %464 = vmatpush.xpose.msra.mxu0 0.0
    %465 = vmatpush.xpose.msra.mxu0 0.0
    %466 = vmatpush.xpose.msra.mxu0 0.0
    %467 = vmatpush.xpose.msra.mxu0 0.0
    %468 = vmatpush.xpose.msra.mxu0 0.0
    %469 = vmatpush.xpose.msra.mxu0 0.0
    %470 = vmatpush.xpose.msra.mxu0 %v454
    %471 = vmatpush.xpose.msra.mxu0 %v451
    %472 = vmatmul.f32.gmra.mxu0 %v445
    %v473 = vpop.f32.mrf.mxu0
    %v474 = vadd.f32 0.0, %v473
    %475 = vmatmul.f32.gmra.mxu0 %v448
    %v476 = vpop.f32.mrf.mxu0
    %v477 = vadd.f32 0.0, %v476
    %478 = vdwg.mxu0
    %v479 = vmul.f32 %v474, 0.25
    %v480 = vmul.f32 %v477, 0.25
    %v481 = vadd.f32 %v479, %v15
    %v482 = vadd.f32 %v480, %v16
    %v483 = vsel %vm232, %v481, -inf
    %484 = vmax.xlane.f32.xlu0 %v483
    %v485 = vpop.xlane.xlu0 %484
    %v486 = vsel %vm232, %v482, -inf
    %487 = vmax.xlane.f32.xlu0 %v486
    %v488 = vpop.xlane.xlu0 %487
    %v489 = vsub.f32 %v481, %v485
    %v490 = vsub.f32 %v482, %v488
    %v491 = vmul.f32 %v489, 1.442695
    %v492 = vpow.pop %v491
    %v493 = vmul.f32 %v490, 1.442695
    %v494 = vpow.pop %v493
    %v495 = vsel %vm232, %v492, 0.0
    %496 = vadd.xlane.f32.xlu0 %v495
    %v497 = vpop.xlane.xlu0 %496
    %v498 = vsel %vm232, %v494, 0.0
    %499 = vadd.xlane.f32.xlu0 %v498
    %v500 = vpop.xlane.xlu0 %499
    %v501 = vrcp.pop %v497
    %v502 = vrcp.pop %v500
    %v503 = vmul.f32 %v492, %v501
    %v504 = vmul.f32 %v494, %v502
    %v506 = vsel %vm232, %v503, 0
    %v509 = vsel %vm232, %v504, 0
    %511 = vmatpush.msra.mxu0 0.0
    %512 = vmatpush.msra.mxu0 0.0
    %513 = vmatpush.msra.mxu0 0.0
    %514 = vmatpush.msra.mxu0 0.0
    %515 = vmatpush.msra.mxu0 0.0
    %516 = vmatpush.msra.mxu0 0.0
    %517 = vmatpush.msra.mxu0 0.0
    %518 = vmatpush.msra.mxu0 0.0
    %519 = vmatpush.msra.mxu0 0.0
    %520 = vmatpush.msra.mxu0 0.0
    %521 = vmatpush.msra.mxu0 0.0
    %522 = vmatpush.msra.mxu0 0.0
    %523 = vmatpush.msra.mxu0 0.0
    %524 = vmatpush.msra.mxu0 0.0
    %525 = vmatpush.msra.mxu0 %v442
    %526 = vmatpush.msra.mxu0 %v439
    %527 = vmatmul.f32.gmra.mxu0 %v506
    %v528 = vpop.f32.mrf.mxu0
    %v529 = vadd.f32 0.0, %v528
    %530 = vmatmul.f32.gmra.mxu0 %v509
    %v531 = vpop.f32.mrf.mxu0
    %v532 = vadd.f32 0.0, %v531
    %533 = vdwg.mxu0
    %v534 = vld [vmem:[%s2 + $0x190] sm:$0xff]
    %v535 = vld [vmem:[%s2 + $0x198] sm:$0xff]
    %v537 = vsel %vm232, %v529, 0
    %v540 = vsel %vm232, %v532, 0
    %542 = vmatpush.msra.mxu0 0.0
    %543 = vmatpush.msra.mxu0 0.0
    %544 = vmatpush.msra.mxu0 0.0
    %545 = vmatpush.msra.mxu0 0.0
    %546 = vmatpush.msra.mxu0 0.0
    %547 = vmatpush.msra.mxu0 0.0
    %548 = vmatpush.msra.mxu0 0.0
    %549 = vmatpush.msra.mxu0 0.0
    %550 = vmatpush.msra.mxu0 0.0
    %551 = vmatpush.msra.mxu0 0.0
    %552 = vmatpush.msra.mxu0 0.0
    %553 = vmatpush.msra.mxu0 0.0
    %554 = vmatpush.msra.mxu0 0.0
    %555 = vmatpush.msra.mxu0 0.0
    %556 = vmatpush.msra.mxu0 %v535
    %557 = vmatpush.msra.mxu0 %v534
    %558 = vmatmul.f32.gmra.mxu0 %v537
    %v559 = vpop.f32.mrf.mxu0
    %v560 = vadd.f32 0.0, %v559
    %561 = vmatmul.f32.gmra.mxu0 %v540
    %v562 = vpop.f32.mrf.mxu0
    %v563 = vadd.f32 0.0, %v562
    %564 = vdwg.mxu0
    %v565 = vadd.f32 %v355, %v560
    %v566 = vadd.f32 %v356, %v563
    %v567 = vadd.f32 %v136, %v565
    %v568 = vadd.f32 %v137, %v566
    %v569 = vld [vmem:[%s2 + $0x1a8] sm:$0x1]
    %v570 = vld [vmem:[%s2 + $0x1b0] sm:$0x1]
    %v571 = vsel %vm80, %v567, 0.0
    %572 = vadd.xlane.f32.xlu0 %v571
    %v573 = vpop.xlane.xlu0 %572
    %v574 = vsel %vm80, %v568, 0.0
    %575 = vadd.xlane.f32.xlu0 %v574
    %v576 = vpop.xlane.xlu0 %575
    %v577 = vmul.f32 %v573, %v93
    %v578 = vmul.f32 %v576, %v93
    %v579 = vsub.f32 %v567, %v577
    %v580 = vsub.f32 %v568, %v578
    %v581 = vmul.f32 %v579, %v579
    %v582 = vmul.f32 %v580, %v580
    %v583 = vsel %vm80, %v581, 0.0
    %584 = vadd.xlane.f32.xlu0 %v583
    %v585 = vpop.xlane.xlu0 %584
    %v586 = vsel %vm80, %v582, 0.0
    %587 = vadd.xlane.f32.xlu0 %v586
    %v588 = vpop.xlane.xlu0 %587
    %v589 = vmul.f32 %v585, %v93
    %v590 = vmul.f32 %v588, %v93
    %v591 = vadd.f32 %v589, 1e-12
    %v592 = vadd.f32 %v590, 1e-12
    %v593 = vrsqrt.pop %v591
    %v594 = vmul.f32 %v593, %v591
    %v595 = vmul.f32 %v594, %v593
    %v596 = vmul.f32 0.5, %v595
    %v597 = vsub.f32 1.5, %v596
    %v598 = vmul.f32 %v593, %v597
    %vm599 = vweird.f32 %v591
    %vm600 = vweird.f32 %v593
    %vm601 = vmor %vm599, %vm600
    %v602 = vsel %vm601, %v593, %v598
    %v603 = vrsqrt.pop %v592
    %v604 = vmul.f32 %v603, %v592
    %v605 = vmul.f32 %v604, %v603
    %v606 = vmul.f32 0.5, %v605
    %v607 = vsub.f32 1.5, %v606
    %v608 = vmul.f32 %v603, %v607
    %vm609 = vweird.f32 %v592
    %vm610 = vweird.f32 %v603
    %vm611 = vmor %vm609, %vm610
    %v612 = vsel %vm611, %v603, %v608
    %v613 = vmul.f32 %v579, %v602
    %v614 = vmul.f32 %v580, %v612
    %v615 = vperm.slane %v569, 0
    %v616 = vmul.f32 %v613, %v615
    %v617 = vmul.f32 %v614, %v615
    %v618 = vperm.slane %v570, 0
    %v619 = vadd.f32 %v616, %v618
    %v620 = vadd.f32 %v617, %v618
    %v621 = vld [vmem:[%s2 + $0x1b8] sm:$0xff]
    %v622 = vld [vmem:[%s2 + $0x1c0] sm:$0xff]
    %v623 = vld [vmem:[%s2 + $0x1c8] sm:$0xff]
    %v624 = vld [vmem:[%s2 + $0x1d0] sm:$0xff]
    %v625 = vld [vmem:[%s2 + $0x1d8] sm:$0x1]
    %v626 = vperm.slane %v625, 0
    %v628 = vsel %vm80, %v619, 0
    %v631 = vsel %vm80, %v620, 0
    %633 = vmatpush.msra.mxu0 0.0
    %634 = vmatpush.msra.mxu0 0.0
    %635 = vmatpush.msra.mxu0 0.0
    %636 = vmatpush.msra.mxu0 0.0
    %637 = vmatpush.msra.mxu0 0.0
    %638 = vmatpush.msra.mxu0 0.0
    %639 = vmatpush.msra.mxu0 0.0
    %640 = vmatpush.msra.mxu0 0.0
    %641 = vmatpush.msra.mxu0 0.0
    %642 = vmatpush.msra.mxu0 0.0
    %643 = vmatpush.msra.mxu0 0.0
    %644 = vmatpush.msra.mxu0 0.0
    %645 = vmatpush.msra.mxu0 %v624
    %646 = vmatpush.msra.mxu0 %v623
    %647 = vmatpush.msra.mxu0 %v622
    %648 = vmatpush.msra.mxu0 %v621
    %649 = vmatmul.f32.gmra.mxu0 %v628
    %v650 = vpop.f32.mrf.mxu0
    %v651 = vadd.f32 %v626, %v650
    %652 = vmatmul.f32.gmra.mxu0 %v631
    %v653 = vpop.f32.mrf.mxu0
    %v654 = vadd.f32 %v626, %v653
    %655 = vdwg.mxu0
    %v656 = vmul.f32 %v651, 0.5
    %v657 = vmul.f32 %v654, 0.5
    %v658 = vmul.f32 %v651, 0.044715
    %v659 = vmul.f32 %v654, 0.044715
    %v660 = vmul.f32 %v658, %v651
    %v661 = vmul.f32 %v659, %v654
    %v662 = vmul.f32 %v660, %v651
    %v663 = vmul.f32 %v661, %v654
    %v664 = vadd.f32 %v651, %v662
    %v665 = vadd.f32 %v654, %v663
    %v666 = vmul.f32 %v664, 0.7978846
    %v667 = vmul.f32 %v665, 0.7978846
    %v668 = vtanh.pop %v666
    %v669 = vtanh.pop %v667
    %v670 = vadd.f32 %v668, 1.0
    %v671 = vadd.f32 %v669, 1.0
    %v672 = vmul.f32 %v656, %v670
    %v673 = vmul.f32 %v657, %v671
    %v674 = vld [vmem:[%s2 + $0x1e0] sm:$0xff]
    %v675 = vld [vmem:[%s2 + $0x1e8] sm:$0xff]
    %v676 = vld [vmem:[%s2 + $0x1f0] sm:$0xff]
    %v677 = vld [vmem:[%s2 + $0x1f8] sm:$0xff]
    %v678 = vld [vmem:[%s2 + $0x200] sm:$0xff]
    %v679 = vld [vmem:[%s2 + $0x208] sm:$0xff]
    %v680 = vld [vmem:[%s2 + $0x210] sm:$0xff]
    %v681 = vld [vmem:[%s2 + $0x218] sm:$0xff]
    %v682 = vld [vmem:[%s2 + $0x220] sm:$0x1]
    %v683 = vperm.slane %v682, 0
    %vm684 = vcmask 523264
    %v686 = vsel %vm684, %v672, 0
    %v689 = vsel %vm684, %v673, 0
    %691 = vmatpush.msra.mxu0 0.0
    %692 = vmatpush.msra.mxu0 0.0
    %693 = vmatpush.msra.mxu0 0.0
    %694 = vmatpush.msra.mxu0 0.0
    %695 = vmatpush.msra.mxu0 0.0
    %696 = vmatpush.msra.mxu0 0.0
    %697 = vmatpush.msra.mxu0 0.0
    %698 = vmatpush.msra.mxu0 0.0
    %699 = vmatpush.msra.mxu0 %v681
    %700 = vmatpush.msra.mxu0 %v680
    %701 = vmatpush.msra.mxu0 %v679
    %702 = vmatpush.msra.mxu0 %v678
    %703 = vmatpush.msra.mxu0 %v677
    %704 = vmatpush.msra.mxu0 %v676
    %705 = vmatpush.msra.mxu0 %v675
    %706 = vmatpush.msra.mxu0 %v674
    %707 = vmatmul.f32.gmra.mxu0 %v686
    %v708 = vpop.f32.mrf.mxu0
    %v709 = vadd.f32 %v683, %v708
    %710 = vmatmul.f32.gmra.mxu0 %v689
    %v711 = vpop.f32.mrf.mxu0
    %v712 = vadd.f32 %v683, %v711
    %713 = vdwg.mxu0
    %v714 = vadd.f32 %v619, %v709
    %v715 = vadd.f32 %v620, %v712
    %v716 = vld [vmem:[%s2 + $0x228] sm:$0x1]
    %v717 = vld [vmem:[%s2 + $0x230] sm:$0x1]
    %v718 = vsel %vm80, %v714, 0.0
    %719 = vadd.xlane.f32.xlu0 %v718
    %v720 = vpop.xlane.xlu0 %719
    %v721 = vsel %vm80, %v715, 0.0
    %722 = vadd.xlane.f32.xlu0 %v721
    %v723 = vpop.xlane.xlu0 %722
    %v724 = vmul.f32 %v720, %v93
    %v725 = vmul.f32 %v723, %v93
    %v726 = vsub.f32 %v714, %v724
    %v727 = vsub.f32 %v715, %v725
    %v728 = vmul.f32 %v726, %v726
    %v729 = vmul.f32 %v727, %v727
    %v730 = vsel %vm80, %v728, 0.0
    %731 = vadd.xlane.f32.xlu0 %v730
    %v732 = vpop.xlane.xlu0 %731
    %v733 = vsel %vm80, %v729, 0.0
    %734 = vadd.xlane.f32.xlu0 %v733
    %v735 = vpop.xlane.xlu0 %734
    %v736 = vmul.f32 %v732, %v93
    %v737 = vmul.f32 %v735, %v93
    %v738 = vadd.f32 %v736, 1e-12
    %v739 = vadd.f32 %v737, 1e-12
    %v740 = vrsqrt.pop %v738
    %v741 = vmul.f32 %v740, %v738
    %v742 = vmul.f32 %v741, %v740
    %v743 = vmul.f32 0.5, %v742
    %v744 = vsub.f32 1.5, %v743
    %v745 = vmul.f32 %v740, %v744
    %vm746 = vweird.f32 %v738
    %vm747 = vweird.f32 %v740
    %vm748 = vmor %vm746, %vm747
    %v749 = vsel %vm748, %v740, %v745
    %v750 = vrsqrt.pop %v739
    %v751 = vmul.f32 %v750, %v739
    %v752 = vmul.f32 %v751, %v750
    %v753 = vmul.f32 0.5, %v752
    %v754 = vsub.f32 1.5, %v753
    %v755 = vmul.f32 %v750, %v754
    %vm756 = vweird.f32 %v739
    %vm757 = vweird.f32 %v750
    %vm758 = vmor %vm756, %vm757
    %v759 = vsel %vm758, %v750, %v755
    %v760 = vmul.f32 %v726, %v749
    %v761 = vmul.f32 %v727, %v759
    %v762 = vperm.slane %v716, 0
    %v763 = vmul.f32 %v760, %v762
    %v764 = vmul.f32 %v761, %v762
    %v765 = vperm.slane %v717, 0
    %v766 = vadd.f32 %v763, %v765
    %v767 = vadd.f32 %v764, %v765
    %v768 = vld [vmem:[%s2 + $0x348] sm:$0x1]
    %v769 = vld [vmem:[%s2 + $0x238] sm:$0xff]
    %v770 = vld [vmem:[%s2 + $0x240] sm:$0xff]
    %v771 = vld [vmem:[%s2 + $0x248] sm:$0xff]
    %v772 = vld [vmem:[%s2 + $0x250] sm:$0xff]
    %v773 = vld [vmem:[%s2 + $0x258] sm:$0x1]
    %v774 = vperm.slane %v773, 0
    %v776 = vsel %vm80, %v766, 0
    %v779 = vsel %vm80, %v767, 0
    %781 = vmatpush.msra.mxu0 0.0
    %782 = vmatpush.msra.mxu0 0.0
    %783 = vmatpush.msra.mxu0 0.0
    %784 = vmatpush.msra.mxu0 0.0
    %785 = vmatpush.msra.mxu0 0.0
    %786 = vmatpush.msra.mxu0 0.0
    %787 = vmatpush.msra.mxu0 0.0
    %788 = vmatpush.msra.mxu0 0.0
    %789 = vmatpush.msra.mxu0 0.0
    %790 = vmatpush.msra.mxu0 0.0
    %791 = vmatpush.msra.mxu0 0.0
    %792 = vmatpush.msra.mxu0 0.0
    %793 = vmatpush.msra.mxu0 %v772
    %794 = vmatpush.msra.mxu0 %v771
    %795 = vmatpush.msra.mxu0 %v770
    %796 = vmatpush.msra.mxu0 %v769
    %797 = vmatmul.f32.gmra.mxu0 %v776
    %v798 = vpop.f32.mrf.mxu0
    %v799 = vadd.f32 %v774, %v798
    %800 = vmatmul.f32.gmra.mxu0 %v779
    %v801 = vpop.f32.mrf.mxu0
    %v802 = vadd.f32 %v774, %v801
    %803 = vdwg.mxu0
    %v804 = vld [vmem:[%s2 + $0x260] sm:$0xff]
    %v805 = vld [vmem:[%s2 + $0x268] sm:$0xff]
    %v806 = vld [vmem:[%s2 + $0x270] sm:$0xff]
    %v807 = vld [vmem:[%s2 + $0x278] sm:$0xff]
    %v808 = vld [vmem:[%s2 + $0x280] sm:$0x1]
    %v809 = vperm.slane %v808, 0
    %810 = vmatpush.msra.mxu0 0.0
    %811 = vmatpush.msra.mxu0 0.0
    %812 = vmatpush.msra.mxu0 0.0
    %813 = vmatpush.msra.mxu0 0.0
    %814 = vmatpush.msra.mxu0 0.0
    %815 = vmatpush.msra.mxu0 0.0
    %816 = vmatpush.msra.mxu0 0.0
    %817 = vmatpush.msra.mxu0 0.0
    %818 = vmatpush.msra.mxu0 0.0
    %819 = vmatpush.msra.mxu0 0.0
    %820 = vmatpush.msra.mxu0 0.0
    %821 = vmatpush.msra.mxu0 0.0
    %822 = vmatpush.msra.mxu0 %v807
    %823 = vmatpush.msra.mxu0 %v806
    %824 = vmatpush.msra.mxu0 %v805
    %825 = vmatpush.msra.mxu0 %v804
    %826 = vmatmul.f32.gmra.mxu0 %v776
    %v827 = vpop.f32.mrf.mxu0
    %v828 = vadd.f32 %v809, %v827
    %829 = vmatmul.f32.gmra.mxu0 %v779
    %v830 = vpop.f32.mrf.mxu0
    %v831 = vadd.f32 %v809, %v830
    %832 = vdwg.mxu0
    %v833 = vld [vmem:[%s2 + $0x288] sm:$0xff]
    %v834 = vld [vmem:[%s2 + $0x290] sm:$0xff]
    %v835 = vld [vmem:[%s2 + $0x298] sm:$0xff]
    %v836 = vld [vmem:[%s2 + $0x2a0] sm:$0xff]
    %v837 = vld [vmem:[%s2 + $0x2a8] sm:$0x1]
    %v838 = vperm.slane %v837, 0
    %839 = vmatpush.msra.mxu0 0.0
    %840 = vmatpush.msra.mxu0 0.0
    %841 = vmatpush.msra.mxu0 0.0
    %842 = vmatpush.msra.mxu0 0.0
    %843 = vmatpush.msra.mxu0 0.0
    %844 = vmatpush.msra.mxu0 0.0
    %845 = vmatpush.msra.mxu0 0.0
    %846 = vmatpush.msra.mxu0 0.0
    %847 = vmatpush.msra.mxu0 0.0
    %848 = vmatpush.msra.mxu0 0.0
    %849 = vmatpush.msra.mxu0 0.0
    %850 = vmatpush.msra.mxu0 0.0
    %851 = vmatpush.msra.mxu0 %v836
    %852 = vmatpush.msra.mxu0 %v835
    %853 = vmatpush.msra.mxu0 %v834
    %854 = vmatpush.msra.mxu0 %v833
    %855 = vmatmul.f32.gmra.mxu0 %v776
    %v856 = vpop.f32.mrf.mxu0
    %v857 = vadd.f32 %v838, %v856
    %858 = vmatmul.f32.gmra.mxu0 %v779
    %v859 = vpop.f32.mrf.mxu0
    %v860 = vadd.f32 %v838, %v859
    %861 = vdwg.mxu0
    %v863 = vsel %vm232, %v799, 0
    %v866 = vsel %vm232, %v802, 0
    %v869 = vsel %vm232, %v828, 0
    %v872 = vsel %vm232, %v831, 0
    %874 = vmatpush.xpose.msra.mxu0 0.0
    %875 = vmatpush.xpose.msra.mxu0 0.0
    %876 = vmatpush.xpose.msra.mxu0 0.0
    %877 = vmatpush.xpose.msra.mxu0 0.0
    %878 = vmatpush.xpose.msra.mxu0 0.0
    %879 = vmatpush.xpose.msra.mxu0 0.0
    %880 = vmatpush.xpose.msra.mxu0 0.0
    %881 = vmatpush.xpose.msra.mxu0 0.0
    %882 = vmatpush.xpose.msra.mxu0 0.0
    %883 = vmatpush.xpose.msra.mxu0 0.0
    %884 = vmatpush.xpose.msra.mxu0 0.0
    %885 = vmatpush.xpose.msra.mxu0 0.0
    %886 = vmatpush.xpose.msra.mxu0 0.0
    %887 = vmatpush.xpose.msra.mxu0 0.0
    %888 = vmatpush.xpose.msra.mxu0 %v872
    %889 = vmatpush.xpose.msra.mxu0 %v869
    %890 = vmatmul.f32.gmra.mxu0 %v863
    %v891 = vpop.f32.mrf.mxu0
    %v892 = vadd.f32 0.0, %v891
    %893 = vmatmul.f32.gmra.mxu0 %v866
    %v894 = vpop.f32.mrf.mxu0
    %v895 = vadd.f32 0.0, %v894
    %896 = vdwg.mxu0
    %v897 = vmul.f32 %v892, 0.25
    %v898 = vmul.f32 %v895, 0.25
    %v899 = vadd.f32 %v897, %v15
    %v900 = vadd.f32 %v898, %v16
    %v901 = vsel %vm232, %v899, -inf
    %902 = vmax.xlane.f32.xlu0 %v901
    %v903 = vpop.xlane.xlu0 %902
    %v904 = vsel %vm232, %v900, -inf
    %905 = vmax.xlane.f32.xlu0 %v904
    %v906 = vpop.xlane.xlu0 %905
    %v907 = vsub.f32 %v899, %v903
    %v908 = vsub.f32 %v900, %v906
    %v909 = vmul.f32 %v907, 1.442695
    %v910 = vpow.pop %v909
    %v911 = vmul.f32 %v908, 1.442695
    %v912 = vpow.pop %v911
    %v913 = vsel %vm232, %v910, 0.0
    %914 = vadd.xlane.f32.xlu0 %v913
    %v915 = vpop.xlane.xlu0 %914
    %v916 = vsel %vm232, %v912, 0.0
    %917 = vadd.xlane.f32.xlu0 %v916
    %v918 = vpop.xlane.xlu0 %917
    %v919 = vrcp.pop %v915
    %v920 = vrcp.pop %v918
    %v921 = vmul.f32 %v910, %v919
    %v922 = vmul.f32 %v912, %v920
    %v924 = vsel %vm232, %v921, 0
    %v927 = vsel %vm232, %v922, 0
    %929 = vmatpush.msra.mxu0 0.0
    %930 = vmatpush.msra.mxu0 0.0
    %931 = vmatpush.msra.mxu0 0.0
    %932 = vmatpush.msra.mxu0 0.0
    %933 = vmatpush.msra.mxu0 0.0
    %934 = vmatpush.msra.mxu0 0.0
    %935 = vmatpush.msra.mxu0 0.0
    %936 = vmatpush.msra.mxu0 0.0
    %937 = vmatpush.msra.mxu0 0.0
    %938 = vmatpush.msra.mxu0 0.0
    %939 = vmatpush.msra.mxu0 0.0
    %940 = vmatpush.msra.mxu0 0.0
    %941 = vmatpush.msra.mxu0 0.0
    %942 = vmatpush.msra.mxu0 0.0
    %943 = vmatpush.msra.mxu0 %v860
    %944 = vmatpush.msra.mxu0 %v857
    %945 = vmatmul.f32.gmra.mxu0 %v924
    %v946 = vpop.f32.mrf.mxu0
    %v947 = vadd.f32 0.0, %v946
    %948 = vmatmul.f32.gmra.mxu0 %v927
    %v949 = vpop.f32.mrf.mxu0
    %v950 = vadd.f32 0.0, %v949
    %951 = vdwg.mxu0
    %v952 = vld [vmem:[%s2 + $0x2b0] sm:$0xff]
    %v953 = vld [vmem:[%s2 + $0x2b8] sm:$0xff]
    %v955 = vsel %vm232, %v947, 0
    %v958 = vsel %vm232, %v950, 0
    %960 = vmatpush.msra.mxu0 0.0
    %961 = vmatpush.msra.mxu0 0.0
    %962 = vmatpush.msra.mxu0 0.0
    %963 = vmatpush.msra.mxu0 0.0
    %964 = vmatpush.msra.mxu0 0.0
    %965 = vmatpush.msra.mxu0 0.0
    %966 = vmatpush.msra.mxu0 0.0
    %967 = vmatpush.msra.mxu0 0.0
    %968 = vmatpush.msra.mxu0 0.0
    %969 = vmatpush.msra.mxu0 0.0
    %970 = vmatpush.msra.mxu0 0.0
    %971 = vmatpush.msra.mxu0 0.0
    %972 = vmatpush.msra.mxu0 0.0
    %973 = vmatpush.msra.mxu0 0.0
    %974 = vmatpush.msra.mxu0 %v953
    %975 = vmatpush.msra.mxu0 %v952
    %976 = vmatmul.f32.gmra.mxu0 %v955
    %v977 = vpop.f32.mrf.mxu0
    %v978 = vadd.f32 0.0, %v977
    %979 = vmatmul.f32.gmra.mxu0 %v958
    %v980 = vpop.f32.mrf.mxu0
    %v981 = vadd.f32 0.0, %v980
    %982 = vdwg.mxu0
    %v983 = vperm.slane %v768, 0
    %v984 = vadd.f32 %v983, %v978
    %v985 = vadd.f32 %v983, %v981
    %v986 = vld [vmem:[%s2 + $0x2c0] sm:$0xff]
    %v987 = vld [vmem:[%s2 + $0x2c8] sm:$0xff]
    %v988 = vld [vmem:[%s2 + $0x2d0] sm:$0xff]
    %v989 = vld [vmem:[%s2 + $0x2d8] sm:$0xff]
    %v990 = vld [vmem:[%s2 + $0x2e0] sm:$0x1]
    %v991 = vperm.slane %v990, 0
    %992 = vmatpush.msra.mxu0 0.0
    %993 = vmatpush.msra.mxu0 0.0
    %994 = vmatpush.msra.mxu0 0.0
    %995 = vmatpush.msra.mxu0 0.0
    %996 = vmatpush.msra.mxu0 0.0
    %997 = vmatpush.msra.mxu0 0.0
    %998 = vmatpush.msra.mxu0 0.0
    %999 = vmatpush.msra.mxu0 0.0
    %1000 = vmatpush.msra.mxu0 0.0
    %1001 = vmatpush.msra.mxu0 0.0
    %1002 = vmatpush.msra.mxu0 0.0
    %1003 = vmatpush.msra.mxu0 0.0
    %1004 = vmatpush.msra.mxu0 %v989
    %1005 = vmatpush.msra.mxu0 %v988
    %1006 = vmatpush.msra.mxu0 %v987
    %1007 = vmatpush.msra.mxu0 %v986
    %1008 = vmatmul.f32.gmra.mxu0 %v776
    %v1009 = vpop.f32.mrf.mxu0
    %v1010 = vadd.f32 %v991, %v1009
    %1011 = vmatmul.f32.gmra.mxu0 %v779
    %v1012 = vpop.f32.mrf.mxu0
    %v1013 = vadd.f32 %v991, %v1012
    %1014 = vdwg.mxu0
    %v1015 = vld [vmem:[%s2 + $0x2e8] sm:$0xff]
    %v1016 = vld [vmem:[%s2 + $0x2f0] sm:$0xff]
    %v1017 = vld [vmem:[%s2 + $0x2f8] sm:$0xff]
    %v1018 = vld [vmem:[%s2 + $0x300] sm:$0xff]
    %v1019 = vld [vmem:[%s2 + $0x308] sm:$0x1]
    %v1020 = vperm.slane %v1019, 0
    %1021 = vmatpush.msra.mxu0 0.0
    %1022 = vmatpush.msra.mxu0 0.0
    %1023 = vmatpush.msra.mxu0 0.0
    %1024 = vmatpush.msra.mxu0 0.0
    %1025 = vmatpush.msra.mxu0 0.0
    %1026 = vmatpush.msra.mxu0 0.0
    %1027 = vmatpush.msra.mxu0 0.0
    %1028 = vmatpush.msra.mxu0 0.0
    %1029 = vmatpush.msra.mxu0 0.0
    %1030 = vmatpush.msra.mxu0 0.0
    %1031 = vmatpush.msra.mxu0 0.0
    %1032 = vmatpush.msra.mxu0 0.0
    %1033 = vmatpush.msra.mxu0 %v1018
    %1034 = vmatpush.msra.mxu0 %v1017
    %1035 = vmatpush.msra.mxu0 %v1016
    %1036 = vmatpush.msra.mxu0 %v1015
    %1037 = vmatmul.f32.gmra.mxu0 %v776
    %v1038 = vpop.f32.mrf.mxu0
    %v1039 = vadd.f32 %v1020, %v1038
    %1040 = vmatmul.f32.gmra.mxu0 %v779
    %v1041 = vpop.f32.mrf.mxu0
    %v1042 = vadd.f32 %v1020, %v1041
    %1043 = vdwg.mxu0
    %v1044 = vld [vmem:[%s2 + $0x310] sm:$0xff]
    %v1045 = vld [vmem:[%s2 + $0x318] sm:$0xff]
    %v1046 = vld [vmem:[%s2 + $0x320] sm:$0xff]
    %v1047 = vld [vmem:[%s2 + $0x328] sm:$0xff]
    %v1048 = vld [vmem:[%s2 + $0x330] sm:$0x1]
    %v1049 = vperm.slane %v1048, 0
    %1050 = vmatpush.msra.mxu0 0.0
    %1051 = vmatpush.msra.mxu0 0.0
    %1052 = vmatpush.msra.mxu0 0.0
    %1053 = vmatpush.msra.mxu0 0.0
    %1054 = vmatpush.msra.mxu0 0.0
    %1055 = vmatpush.msra.mxu0 0.0
    %1056 = vmatpush.msra.mxu0 0.0
    %1057 = vmatpush.msra.mxu0 0.0
    %1058 = vmatpush.msra.mxu0 0.0
    %1059 = vmatpush.msra.mxu0 0.0
    %1060 = vmatpush.msra.mxu0 0.0
    %1061 = vmatpush.msra.mxu0 0.0
    %1062 = vmatpush.msra.mxu0 %v1047
    %1063 = vmatpush.msra.mxu0 %v1046
    %1064 = vmatpush.msra.mxu0 %v1045
    %1065 = vmatpush.msra.mxu0 %v1044
    %1066 = vmatmul.f32.gmra.mxu0 %v776
    %v1067 = vpop.f32.mrf.mxu0
    %v1068 = vadd.f32 %v1049, %v1067
    %1069 = vmatmul.f32.gmra.mxu0 %v779
    %v1070 = vpop.f32.mrf.mxu0
    %v1071 = vadd.f32 %v1049, %v1070
    %1072 = vdwg.mxu0
    %v1074 = vsel %vm232, %v1010, 0
    %v1077 = vsel %vm232, %v1013, 0
    %v1080 = vsel %vm232, %v1039, 0
    %v1083 = vsel %vm232, %v1042, 0
    %1085 = vmatpush.xpose.msra.mxu0 0.0
    %1086 = vmatpush.xpose.msra.mxu0 0.0
    %1087 = vmatpush.xpose.msra.mxu0 0.0
    %1088 = vmatpush.xpose.msra.mxu0 0.0
    %1089 = vmatpush.xpose.msra.mxu0 0.0
    %1090 = vmatpush.xpose.msra.mxu0 0.0
    %1091 = vmatpush.xpose.msra.mxu0 0.0
    %1092 = vmatpush.xpose.msra.mxu0 0.0
    %1093 = vmatpush.xpose.msra.mxu0 0.0
    %1094 = vmatpush.xpose.msra.mxu0 0.0
    %1095 = vmatpush.xpose.msra.mxu0 0.0
    %1096 = vmatpush.xpose.msra.mxu0 0.0
    %1097 = vmatpush.xpose.msra.mxu0 0.0
    %1098 = vmatpush.xpose.msra.mxu0 0.0
    %1099 = vmatpush.xpose.msra.mxu0 %v1083
    %1100 = vmatpush.xpose.msra.mxu0 %v1080
    %1101 = vmatmul.f32.gmra.mxu0 %v1074
    %v1102 = vpop.f32.mrf.mxu0
    %v1103 = vadd.f32 0.0, %v1102
    %1104 = vmatmul.f32.gmra.mxu0 %v1077
    %v1105 = vpop.f32.mrf.mxu0
    %v1106 = vadd.f32 0.0, %v1105
    %1107 = vdwg.mxu0
    %v1108 = vmul.f32 %v1103, 0.25
    %v1109 = vmul.f32 %v1106, 0.25
    %v1110 = vadd.f32 %v1108, %v15
    %v1111 = vadd.f32 %v1109, %v16
    %v1112 = vsel %vm232, %v1110, -inf
    %1113 = vmax.xlane.f32.xlu0 %v1112
    %v1114 = vpop.xlane.xlu0 %1113
    %v1115 = vsel %vm232, %v1111, -inf
    %1116 = vmax.xlane.f32.xlu0 %v1115
    %v1117 = vpop.xlane.xlu0 %1116
    %v1118 = vsub.f32 %v1110, %v1114
    %v1119 = vsub.f32 %v1111, %v1117
    %v1120 = vmul.f32 %v1118, 1.442695
    %v1121 = vpow.pop %v1120
    %v1122 = vmul.f32 %v1119, 1.442695
    %v1123 = vpow.pop %v1122
    %v1124 = vsel %vm232, %v1121, 0.0
    %1125 = vadd.xlane.f32.xlu0 %v1124
    %v1126 = vpop.xlane.xlu0 %1125
    %v1127 = vsel %vm232, %v1123, 0.0
    %1128 = vadd.xlane.f32.xlu0 %v1127
    %v1129 = vpop.xlane.xlu0 %1128
    %v1130 = vrcp.pop %v1126
    %v1131 = vrcp.pop %v1129
    %v1132 = vmul.f32 %v1121, %v1130
    %v1133 = vmul.f32 %v1123, %v1131
    %v1135 = vsel %vm232, %v1132, 0
    %v1138 = vsel %vm232, %v1133, 0
    %1140 = vmatpush.msra.mxu0 0.0
    %1141 = vmatpush.msra.mxu0 0.0
    %1142 = vmatpush.msra.mxu0 0.0
    %1143 = vmatpush.msra.mxu0 0.0
    %1144 = vmatpush.msra.mxu0 0.0
    %1145 = vmatpush.msra.mxu0 0.0
    %1146 = vmatpush.msra.mxu0 0.0
    %1147 = vmatpush.msra.mxu0 0.0
    %1148 = vmatpush.msra.mxu0 0.0
    %1149 = vmatpush.msra.mxu0 0.0
    %1150 = vmatpush.msra.mxu0 0.0
    %1151 = vmatpush.msra.mxu0 0.0
    %1152 = vmatpush.msra.mxu0 0.0
    %1153 = vmatpush.msra.mxu0 0.0
    %1154 = vmatpush.msra.mxu0 %v1071
    %1155 = vmatpush.msra.mxu0 %v1068
    %1156 = vmatmul.f32.gmra.mxu0 %v1135
    %v1157 = vpop.f32.mrf.mxu0
    %v1158 = vadd.f32 0.0, %v1157
    %1159 = vmatmul.f32.gmra.mxu0 %v1138
    %v1160 = vpop.f32.mrf.mxu0
    %v1161 = vadd.f32 0.0, %v1160
    %1162 = vdwg.mxu0
    %v1163 = vld [vmem:[%s2 + $0x338] sm:$0xff]
    %v1164 = vld [vmem:[%s2 + $0x340] sm:$0xff]
    %v1166 = vsel %vm232, %v1158, 0
    %v1169 = vsel %vm232, %v1161, 0
    %1171 = vmatpush.msra.mxu0 0.0
    %1172 = vmatpush.msra.mxu0 0.0
    %1173 = vmatpush.msra.mxu0 0.0
    %1174 = vmatpush.msra.mxu0 0.0
    %1175 = vmatpush.msra.mxu0 0.0
    %1176 = vmatpush.msra.mxu0 0.0
    %1177 = vmatpush.msra.mxu0 0.0
    %1178 = vmatpush.msra.mxu0 0.0
    %1179 = vmatpush.msra.mxu0 0.0
    %1180 = vmatpush.msra.mxu0 0.0
    %1181 = vmatpush.msra.mxu0 0.0
    %1182 = vmatpush.msra.mxu0 0.0
    %1183 = vmatpush.msra.mxu0 0.0
    %1184 = vmatpush.msra.mxu0 0.0
    %1185 = vmatpush.msra.mxu0 %v1164
    %1186 = vmatpush.msra.mxu0 %v1163
    %1187 = vmatmul.f32.gmra.mxu0 %v1166
    %v1188 = vpop.f32.mrf.mxu0
    %v1189 = vadd.f32 0.0, %v1188
    %1190 = vmatmul.f32.gmra.mxu0 %v1169
    %v1191 = vpop.f32.mrf.mxu0
    %v1192 = vadd.f32 0.0, %v1191
    %1193 = vdwg.mxu0
    %v1194 = vadd.f32 %v984, %v1189
    %v1195 = vadd.f32 %v985, %v1192
    %v1196 = vadd.f32 %v766, %v1194
    %v1197 = vadd.f32 %v767, %v1195
    %v1198 = vld [vmem:[%s2 + $0x350] sm:$0x1]
    %v1199 = vld [vmem:[%s2 + $0x358] sm:$0x1]
    %v1200 = vsel %vm80, %v1196, 0.0
    %1201 = vadd.xlane.f32.xlu0 %v1200
    %v1202 = vpop.xlane.xlu0 %1201
    %v1203 = vsel %vm80, %v1197, 0.0
    %1204 = vadd.xlane.f32.xlu0 %v1203
    %v1205 = vpop.xlane.xlu0 %1204
    %v1206 = vmul.f32 %v1202, %v93
    %v1207 = vmul.f32 %v1205, %v93
    %v1208 = vsub.f32 %v1196, %v1206
    %v1209 = vsub.f32 %v1197, %v1207
    %v1210 = vmul.f32 %v1208, %v1208
    %v1211 = vmul.f32 %v1209, %v1209
    %v1212 = vsel %vm80, %v1210, 0.0
    %1213 = vadd.xlane.f32.xlu0 %v1212
    %v1214 = vpop.xlane.xlu0 %1213
    %v1215 = vsel %vm80, %v1211, 0.0
    %1216 = vadd.xlane.f32.xlu0 %v1215
    %v1217 = vpop.xlane.xlu0 %1216
    %v1218 = vmul.f32 %v1214, %v93
    %v1219 = vmul.f32 %v1217, %v93
    %v1220 = vadd.f32 %v1218, 1e-12
    %v1221 = vadd.f32 %v1219, 1e-12
    %v1222 = vrsqrt.pop %v1220
    %v1223 = vmul.f32 %v1222, %v1220
    %v1224 = vmul.f32 %v1223, %v1222
    %v1225 = vmul.f32 0.5, %v1224
    %v1226 = vsub.f32 1.5, %v1225
    %v1227 = vmul.f32 %v1222, %v1226
    %vm1228 = vweird.f32 %v1220
    %vm1229 = vweird.f32 %v1222
    %vm1230 = vmor %vm1228, %vm1229
    %v1231 = vsel %vm1230, %v1222, %v1227
    %v1232 = vrsqrt.pop %v1221
    %v1233 = vmul.f32 %v1232, %v1221
    %v1234 = vmul.f32 %v1233, %v1232
    %v1235 = vmul.f32 0.5, %v1234
    %v1236 = vsub.f32 1.5, %v1235
    %v1237 = vmul.f32 %v1232, %v1236
    %vm1238 = vweird.f32 %v1221
    %vm1239 = vweird.f32 %v1232
    %vm1240 = vmor %vm1238, %vm1239
    %v1241 = vsel %vm1240, %v1232, %v1237
    %v1242 = vmul.f32 %v1208, %v1231
    %v1243 = vmul.f32 %v1209, %v1241
    %v1244 = vperm.slane %v1198, 0
    %v1245 = vmul.f32 %v1242, %v1244
    %v1246 = vmul.f32 %v1243, %v1244
    %v1247 = vperm.slane %v1199, 0
    %v1248 = vadd.f32 %v1245, %v1247
    %v1249 = vadd.f32 %v1246, %v1247
    %v1250 = vld [vmem:[%s2 + $0x360] sm:$0xff]
    %v1251 = vld [vmem:[%s2 + $0x368] sm:$0xff]
    %v1252 = vld [vmem:[%s2 + $0x370] sm:$0xff]
    %v1253 = vld [vmem:[%s2 + $0x378] sm:$0xff]
    %v1254 = vld [vmem:[%s2 + $0x380] sm:$0x1]
    %v1255 = vperm.slane %v1254, 0
    %v1257 = vsel %vm80, %v1248, 0
    %v1260 = vsel %vm80, %v1249, 0
    %1262 = vmatpush.msra.mxu0 0.0
    %1263 = vmatpush.msra.mxu0 0.0
    %1264 = vmatpush.msra.mxu0 0.0
    %1265 = vmatpush.msra.mxu0 0.0
    %1266 = vmatpush.msra.mxu0 0.0
    %1267 = vmatpush.msra.mxu0 0.0
    %1268 = vmatpush.msra.mxu0 0.0
    %1269 = vmatpush.msra.mxu0 0.0
    %1270 = vmatpush.msra.mxu0 0.0
    %1271 = vmatpush.msra.mxu0 0.0
    %1272 = vmatpush.msra.mxu0 0.0
    %1273 = vmatpush.msra.mxu0 0.0
    %1274 = vmatpush.msra.mxu0 %v1253
    %1275 = vmatpush.msra.mxu0 %v1252
    %1276 = vmatpush.msra.mxu0 %v1251
    %1277 = vmatpush.msra.mxu0 %v1250
    %1278 = vmatmul.f32.gmra.mxu0 %v1257
    %v1279 = vpop.f32.mrf.mxu0
    %v1280 = vadd.f32 %v1255, %v1279
    %1281 = vmatmul.f32.gmra.mxu0 %v1260
    %v1282 = vpop.f32.mrf.mxu0
    %v1283 = vadd.f32 %v1255, %v1282
    %1284 = vdwg.mxu0
    %v1285 = vmul.f32 %v1280, 0.5
    %v1286 = vmul.f32 %v1283, 0.5
    %v1287 = vmul.f32 %v1280, 0.044715
    %v1288 = vmul.f32 %v1283, 0.044715
    %v1289 = vmul.f32 %v1287, %v1280
    %v1290 = vmul.f32 %v1288, %v1283
    %v1291 = vmul.f32 %v1289, %v1280
    %v1292 = vmul.f32 %v1290, %v1283
    %v1293 = vadd.f32 %v1280, %v1291
    %v1294 = vadd.f32 %v1283, %v1292
    %v1295 = vmul.f32 %v1293, 0.7978846
    %v1296 = vmul.f32 %v1294, 0.7978846
    %v1297 = vtanh.pop %v1295
    %v1298 = vtanh.pop %v1296
    %v1299 = vadd.f32 %v1297, 1.0
    %v1300 = vadd.f32 %v1298, 1.0
    %v1301 = vmul.f32 %v1285, %v1299
    %v1302 = vmul.f32 %v1286, %v1300
    %v1303 = vld [vmem:[%s2 + $0x388] sm:$0xff]
    %v1304 = vld [vmem:[%s2 + $0x390] sm:$0xff]
    %v1305 = vld [vmem:[%s2 + $0x398] sm:$0xff]
    %v1306 = vld [vmem:[%s2 + $0x3a0] sm:$0xff]
    %v1307 = vld [vmem:[%s2 + $0x3a8] sm:$0xff]
    %v1308 = vld [vmem:[%s2 + $0x3b0] sm:$0xff]
    %v1309 = vld [vmem:[%s2 + $0x3b8] sm:$0xff]
    %v1310 = vld [vmem:[%s2 + $0x3c0] sm:$0xff]
    %v1311 = vld [vmem:[%s2 + $0x3c8] sm:$0x1]
    %v1312 = vperm.slane %v1311, 0
    %v1314 = vsel %vm684, %v1301, 0
    %v1317 = vsel %vm684, %v1302, 0
    %1319 = vmatpush.msra.mxu0 0.0
    %1320 = vmatpush.msra.mxu0 0.0
    %1321 = vmatpush.msra.mxu0 0.0
    %1322 = vmatpush.msra.mxu0 0.0
    %1323 = vmatpush.msra.mxu0 0.0
    %1324 = vmatpush.msra.mxu0 0.0
    %1325 = vmatpush.msra.mxu0 0.0
    %1326 = vmatpush.msra.mxu0 0.0
    %1327 = vmatpush.msra.mxu0 %v1310
    %1328 = vmatpush.msra.mxu0 %v1309
    %1329 = vmatpush.msra.mxu0 %v1308
    %1330 = vmatpush.msra.mxu0 %v1307
    %1331 = vmatpush.msra.mxu0 %v1306
    %1332 = vmatpush.msra.mxu0 %v1305
    %1333 = vmatpush.msra.mxu0 %v1304
    %1334 = vmatpush.msra.mxu0 %v1303
    %1335 = vmatmul.f32.gmra.mxu0 %v1314
    %v1336 = vpop.f32.mrf.mxu0
    %v1337 = vadd.f32 %v1312, %v1336
    %1338 = vmatmul.f32.gmra.mxu0 %v1317
    %v1339 = vpop.f32.mrf.mxu0
    %v1340 = vadd.f32 %v1312, %v1339
    %1341 = vdwg.mxu0
    %v1342 = vadd.f32 %v1248, %v1337
    %v1343 = vadd.f32 %v1249, %v1340
    %v1344 = vld [vmem:[%s2 + $0x3d0] sm:$0x1]
    %v1345 = vld [vmem:[%s2 + $0x3d8] sm:$0x1]
    %v1346 = vsel %vm80, %v1342, 0.0
    %1347 = vadd.xlane.f32.xlu0 %v1346
    %v1348 = vpop.xlane.xlu0 %1347
    %v1349 = vsel %vm80, %v1343, 0.0
    %1350 = vadd.xlane.f32.xlu0 %v1349
    %v1351 = vpop.xlane.xlu0 %1350
    %v1352 = vmul.f32 %v1348, %v93
    %v1353 = vmul.f32 %v1351, %v93
    %v1354 = vsub.f32 %v1342, %v1352
    %v1355 = vsub.f32 %v1343, %v1353
    %v1356 = vmul.f32 %v1354, %v1354
    %v1357 = vmul.f32 %v1355, %v1355
    %v1358 = vsel %vm80, %v1356, 0.0
    %1359 = vadd.xlane.f32.xlu0 %v1358
    %v1360 = vpop.xlane.xlu0 %1359
    %v1361 = vsel %vm80, %v1357, 0.0
    %1362 = vadd.xlane.f32.xlu0 %v1361
    %v1363 = vpop.xlane.xlu0 %1362
    %v1364 = vmul.f32 %v1360, %v93
    %v1365 = vmul.f32 %v1363, %v93
    %v1366 = vadd.f32 %v1364, 1e-12
    %v1367 = vadd.f32 %v1365, 1e-12
    %v1368 = vrsqrt.pop %v1366
    %v1369 = vmul.f32 %v1368, %v1366
    %v1370 = vmul.f32 %v1369, %v1368
    %v1371 = vmul.f32 0.5, %v1370
    %v1372 = vsub.f32 1.5, %v1371
    %v1373 = vmul.f32 %v1368, %v1372
    %vm1374 = vweird.f32 %v1366
    %vm1375 = vweird.f32 %v1368
    %vm1376 = vmor %vm1374, %vm1375
    %v1377 = vsel %vm1376, %v1368, %v1373
    %v1378 = vrsqrt.pop %v1367
    %v1379 = vmul.f32 %v1378, %v1367
    %v1380 = vmul.f32 %v1379, %v1378
    %v1381 = vmul.f32 0.5, %v1380
    %v1382 = vsub.f32 1.5, %v1381
    %v1383 = vmul.f32 %v1378, %v1382
    %vm1384 = vweird.f32 %v1367
    %vm1385 = vweird.f32 %v1378
    %vm1386 = vmor %vm1384, %vm1385
    %v1387 = vsel %vm1386, %v1378, %v1383
    %v1388 = vmul.f32 %v1354, %v1377
    %v1389 = vmul.f32 %v1355, %v1387
    %v1390 = vperm.slane %v1344, 0
    %v1391 = vmul.f32 %v1388, %v1390
    %v1392 = vmul.f32 %v1389, %v1390
    %v1393 = vperm.slane %v1345, 0
    %v1394 = vadd.f32 %v1391, %v1393
    %v1395 = vadd.f32 %v1392, %v1393
    %v1396 = vld [vmem:[%s2 + $0x88] sm:$0x3]
    %v1398 = vsel %vm232, %v1396, 0
    %1400 = vmatpush.msra.mxu0 0.0
    %1401 = vmatpush.msra.mxu0 0.0
    %1402 = vmatpush.msra.mxu0 0.0
    %1403 = vmatpush.msra.mxu0 0.0
    %1404 = vmatpush.msra.mxu0 0.0
    %1405 = vmatpush.msra.mxu0 0.0
    %1406 = vmatpush.msra.mxu0 0.0
    %1407 = vmatpush.msra.mxu0 0.0
    %1408 = vmatpush.msra.mxu0 0.0
    %1409 = vmatpush.msra.mxu0 0.0
    %1410 = vmatpush.msra.mxu0 0.0
    %1411 = vmatpush.msra.mxu0 0.0
    %1412 = vmatpush.msra.mxu0 0.0
    %1413 = vmatpush.msra.mxu0 0.0
    %1414 = vmatpush.msra.mxu0 %v1395
    %1415 = vmatpush.msra.mxu0 %v1394
    %1416 = vmatmul.f32.gmra.mxu0 %v1398
    %v1417 = vpop.f32.mrf.mxu0
    %v1418 = vadd.f32 0.0, %v1417
    %1419 = vdwg.mxu0
    %v1420 = vld [vmem:[%s2 + $0x3e0] sm:$0xff]
    %v1421 = vld [vmem:[%s2 + $0x3e8] sm:$0xff]
    %v1422 = vld [vmem:[%s2 + $0x3f0] sm:$0xff]
    %v1423 = vld [vmem:[%s2 + $0x3f8] sm:$0xff]
    %v1424 = vld [vmem:[%s2 + $0x400] sm:$0x1]
    %v1425 = vperm.slane %v1424, 0
    %v1427 = vsel %vm80, %v1418, 0
    %1429 = vmatpush.msra.mxu0 0.0
    %1430 = vmatpush.msra.mxu0 0.0
    %1431 = vmatpush.msra.mxu0 0.0
    %1432 = vmatpush.msra.mxu0 0.0
    %1433 = vmatpush.msra.mxu0 0.0
    %1434 = vmatpush.msra.mxu0 0.0
    %1435 = vmatpush.msra.mxu0 0.0
    %1436 = vmatpush.msra.mxu0 0.0
    %1437 = vmatpush.msra.mxu0 0.0
    %1438 = vmatpush.msra.mxu0 0.0
    %1439 = vmatpush.msra.mxu0 0.0
    %1440 = vmatpush.msra.mxu0 0.0
    %1441 = vmatpush.msra.mxu0 %v1423
    %1442 = vmatpush.msra.mxu0 %v1422
    %1443 = vmatpush.msra.mxu0 %v1421
    %1444 = vmatpush.msra.mxu0 %v1420
    %1445 = vmatmul.f32.gmra.mxu0 %v1427
    %v1446 = vpop.f32.mrf.mxu0
    %v1447 = vadd.f32 %v1425, %v1446
    %1448 = vdwg.mxu0
    %v1449 = vtanh.pop %v1447
    %v1450 = vld [vmem:[%s2 + $0x408] sm:$0xff]
    %v1451 = vld [vmem:[%s2 + $0x410] sm:$0xff]
    %v1452 = vld [vmem:[%s2 + $0x418] sm:$0xff]
    %v1453 = vld [vmem:[%s2 + $0x420] sm:$0xff]
    %v1454 = vld [vmem:[%s2 + $0x428] sm:$0x1]
    %v1455 = vperm.slane %v1454, 0
    %v1457 = vsel %vm80, %v1449, 0
    %1459 = vmatpush.msra.mxu0 0.0
    %1460 = vmatpush.msra.mxu0 0.0
    %1461 = vmatpush.msra.mxu0 0.0
    %1462 = vmatpush.msra.mxu0 0.0
    %1463 = vmatpush.msra.mxu0 0.0
    %1464 = vmatpush.msra.mxu0 0.0
    %1465 = vmatpush.msra.mxu0 0.0
    %1466 = vmatpush.msra.mxu0 0.0
    %1467 = vmatpush.msra.mxu0 0.0
    %1468 = vmatpush.msra.mxu0 0.0
    %1469 = vmatpush.msra.mxu0 0.0
    %1470 = vmatpush.msra.mxu0 0.0
    %1471 = vmatpush.msra.mxu0 %v1453
    %1472 = vmatpush.msra.mxu0 %v1452
    %1473 = vmatpush.msra.mxu0 %v1451
    %1474 = vmatpush.msra.mxu0 %v1450
    %1475 = vmatmul.f32.gmra.mxu0 %v1457
    %v1476 = vpop.f32.mrf.mxu0
    %v1477 = vadd.f32 %v1455, %v1476
    %1478 = vdwg.mxu0
    %vm1479 = vcmask 17408
    %1480 = vst.msk [vmem:[#allocation2] sm:$0x3] %vm1479, %v1477
    // Predicated region
    $region14: #{forward.1} parent=1 // pred_check
      _
    $region15: #{forward.1} parent=1 // pred_check_branch
      %1482 = sbr.rel (0) target = $region17
    $region16: #{forward.1} parent=1 // pred_region
      %1484 = vsyncadd [#allocation3], 0
      %s1486 = sshll.u32 [#allocation2], 4
      %s1487 = int_to_ptr.vmem [resolvable:$true] %s1486
      %s1488 = sshll.u32 %s3, 4
      %s1489 = int_to_ptr.hbm [resolvable:$true] %s1488
      %1491 = dma.vmem_to_hbm [thread:$0]  %s1487, 32, %s1489, [#allocation3]
    $region17: #{forward.1} parent=1 // pred_fallthru
      _
    // Predicated region
    $region18: #{forward.1} parent=1 // pred_check
      _
    $region19: #{forward.1} parent=1 // pred_check_branch
      %1493 = sbr.rel (0) target = $region21
    $region20: #{forward.1} parent=1 // pred_region
      %1495 = dma.done [#allocation3], 32
    $region21: #{forward.1} parent=1 // pred_fallthru
      _
    %1496 = vsyncpa [#allocation3], 1

</llo_original>
